<compile_context>
chip_gen: v7x
topology: tpu7x:2x2x1
jax: 0.10.0
libtpu: 0.0.40
codegen_flags: <defaults>
</compile_context>

<pallas_src>
import functools

import jax
import jax.numpy as jnp
from jax import lax
from jax.experimental import pallas as pl
from jax.experimental.pallas import tpu as pltpu


def _mha_fused_kernel(x_ref, w_ref, o_ref, *, num_heads, d_out, mxu_dtype):
    # x_ref : (Bb, T, d_in)        block of batch rows
    # w_ref : (d_in, 3*H*d_out)    fused [Wq*scale | Wk | Wv], already mxu_dtype
    # o_ref : (Bb, T, H*d_out)     lane-dense output block (== torch.cat(heads, -1))
    Bb, T, d_in = x_ref.shape
    HD = num_heads * d_out

    # Collapse leading dims so the fused projection fills the MXU M dimension.
    x = x_ref[...].reshape(Bb * T, d_in)
    if mxu_dtype is not None and x.dtype != mxu_dtype:
        x = x.astype(mxu_dtype)
    w = w_ref[...]                                   # no in-kernel weight cast

    # Fused Q/K/V projection for ALL heads and all Bb rows: one MXU matmul,
    # f32 accumulation.  Scale is already folded into the Wq columns.
    qkv = jnp.dot(x, w, preferred_element_type=jnp.float32)   # (Bb*T, 3*HD) f32
    if mxu_dtype is not None:
        qkv = qkv.astype(mxu_dtype)   # single cast; all heads/rows slice this copy

    # Causal additive bias (0 / -inf), built once and shared by all heads/rows.
    # (Diagonal is never masked, so no fully -inf row -> no NaN from the softmax.)
    row = lax.broadcasted_iota(jnp.int32, (T, T), 0)
    col = lax.broadcasted_iota(jnp.int32, (T, T), 1)
    bias = jnp.where(col > row, -jnp.inf, 0.0).astype(jnp.float32)

    for b in range(Bb):                              # static unroll over rows
        rows = qkv[b * T:(b + 1) * T]                # (T, 3*HD)
        for h in range(num_heads):                   # static unroll over heads
            q = rows[:, h * d_out:(h + 1) * d_out]                    # (T, d_out)
            k = rows[:, HD + h * d_out:HD + (h + 1) * d_out]          # (T, d_out)
            v = rows[:, 2 * HD + h * d_out:2 * HD + (h + 1) * d_out]  # (T, d_out)

            # q @ k^T without materializing a transpose: contract last dims.
            # q is pre-scaled (scale folded into Wq), so scores are already
            # scaled; masked entries become -inf via the additive bias, which
            # matches PyTorch's mask-then-scale exactly.
            scores = lax.dot_general(
                q, k, (((1,), (1,)), ((), ())),
                preferred_element_type=jnp.float32)                   # (T, T) f32
            s = scores + bias

            # Numerically-stable softmax in f32.
            m = jnp.max(s, axis=-1, keepdims=True)
            e = jnp.exp(s - m)
            denom = jnp.sum(e, axis=-1, keepdims=True)
            # approx=True would move the divide onto the idle EUP slot (worth it
            # on v6e/v7x if the softmax path binds); kept exact for 1e-5 parity.
            attn = e * pl.reciprocal(denom, approx=False)             # (T, T) f32

            # Dropout on attn is identity (eval semantics).
            p = attn.astype(qkv.dtype)   # mxu dtype if set, else f32 (no-op)
            ctx = jnp.dot(p, v, preferred_element_type=jnp.float32)   # (T, d_out)

            # Direct static-slice store: zero-cost ref view, no concat epilogue,
            # only one head context live at a time.
            o_ref[b, :, h * d_out:(h + 1) * d_out] = ctx.astype(o_ref.dtype)


def multi_head_attention_wrapper(x, wq, wk, wv, *, mxu_dtype=jnp.bfloat16,
                                 block_rows=None):
    """x: (B, T, d_in); wq/wk/wv: (H, d_in, d_out) -> (B, T, H*d_out).

    Per-head weights are stored as (H, d_in, d_out) (i.e. nn.Linear.weight.T per
    head).  They are fused wrapper-side into a single (d_in, 3*H*d_out) slab,
    with 1/sqrt(d_out) folded into the Wq columns in f32, then cast to
    `mxu_dtype` (bf16 by default on every TPU generation: the MXU is bf16-native
    and the slab DMA halves).  Softmax / accumulation stay f32 inside the
    kernel.  Pass mxu_dtype=None for exact f32 parity with the PyTorch module.
    """
    B, T, d_in = x.shape
    H, _, d_out = wq.shape
    HD = H * d_out

    scale = jnp.float32(d_out) ** -0.5

    def fuse(w):  # (H, d_in, d_out) -> (d_in, H*d_out), head-major columns
        return w.transpose(1, 0, 2).reshape(d_in, HD)

    # Fold the query scale in f32 BEFORE any low-precision cast.
    w_qkv = jnp.concatenate(
        [fuse(wq.astype(jnp.float32) * scale), fuse(wk), fuse(wv)], axis=1)
    if mxu_dtype is not None:
        w_qkv = w_qkv.astype(mxu_dtype)            # wrapper-side cast, DMA'd once

    # Block multiple batch rows per grid step so Bb*T fills the MXU M dim
    # (>=256 on v6e/v7x when B allows), while keeping B % Bb == 0.
    if block_rows is None:
        block_rows = min(B, max(1, 256 // max(T, 1)))
    block_rows = max(1, min(block_rows, B))
    while B % block_rows:
        block_rows -= 1

    kernel = functools.partial(_mha_fused_kernel,
                               num_heads=H, d_out=d_out, mxu_dtype=mxu_dtype)

    return pl.pallas_call(
        kernel,
        out_shape=jax.ShapeDtypeStruct((B, T, HD), x.dtype),
        grid_spec=pltpu.PrefetchScalarGridSpec(
            num_scalar_prefetch=0,
            grid=(B // block_rows,),
            in_specs=[
                pl.BlockSpec((block_rows, T, d_in), lambda b: (b, 0, 0)),
                # Constant index -> weight slab DMA'd once, resident across grid.
                pl.BlockSpec((d_in, 3 * HD), lambda b: (0, 0)),
            ],
            out_specs=pl.BlockSpec((block_rows, T, HD), lambda b: (b, 0, 0)),
        ),
        compiler_params=pltpu.CompilerParams(
            dimension_semantics=("parallel",),
            vmem_limit_bytes=64 * 1024 * 1024),
    )(x, w_qkv)


def _reference(x, wq, wk, wv):
    """Pure-JAX reference matching the PyTorch forward exactly."""
    B, T, d_in = x.shape
    H, _, d_out = wq.shape
    outs = []
    for h in range(H):
        q = x @ wq[h]
        k = x @ wk[h]
        v = x @ wv[h]
        scores = jnp.einsum("btd,bsd->bts", q, k)
        mask = jnp.triu(jnp.ones((T, T), dtype=bool), k=1)
        scores = jnp.where(mask[None], -jnp.inf, scores)
        w = jax.nn.softmax(scores / (d_out ** 0.5), axis=-1)
        outs.append(jnp.einsum("bts,bsd->btd", w, v))
    return jnp.concatenate(outs, axis=-1)


if __name__ == "__main__":
    # Module hyperparameters (small, consistent with the forward pass)
    B, T, d_in, d_out, H = 2, 8, 16, 8, 4   # context_length == T == 8
    key = jax.random.PRNGKey(0)
    kx, kq, kk, kv = jax.random.split(key, 4)

    x = jax.random.normal(kx, (B, T, d_in), dtype=jnp.float32)
    # Deterministic per-head weights, stored as (H, d_in, d_out) (Linear.weight.T)
    wq = jax.random.normal(kq, (H, d_in, d_out), dtype=jnp.float32) * 0.1
    wk = jax.random.normal(kk, (H, d_in, d_out), dtype=jnp.float32) * 0.1
    wv = jax.random.normal(kv, (H, d_in, d_out), dtype=jnp.float32) * 0.1

    ref = _reference(x, wq, wk, wv)

    # f32 path: exact parity with the PyTorch/JAX reference.
    out_f32 = multi_head_attention_wrapper(x, wq, wk, wv, mxu_dtype=None)
    jax.block_until_ready(out_f32)
    assert out_f32.shape == (B, T, H * d_out)
    assert jnp.allclose(out_f32, ref, atol=1e-5, rtol=1e-5)

    # Default path: bf16 MXU feed on all generations (f32 accumulate + softmax).
    out_bf16 = multi_head_attention_wrapper(x, wq, wk, wv)
    jax.block_until_ready(out_bf16)
    assert out_bf16.shape == (B, T, H * d_out)
    assert jnp.allclose(out_bf16, ref, atol=5e-2, rtol=5e-2)

    print("KERNEL_OK")
</pallas_src>

<mosaic_0001>
module attributes {stable_mosaic.version = 11 : i64} {
  func.func @_mha_fused_kernel(%arg0: i32, %arg1: memref<2x8x16xf32, #tpu.memory_space<vmem>>, %arg2: memref<16x96xf32, #tpu.memory_space<vmem>>, %arg3: memref<2x8x32xf32, #tpu.memory_space<vmem>>) attributes {dimension_semantics = [#tpu.dimension_semantics<parallel>], iteration_bounds = array<i64: 1>, scalar_prefetch = 0 : i64, scratch_operands = 0 : i64, tpu.core_type = #tpu.core_type<tc>, window_params = [{transform_indices = @transform_0, window_bounds = array<i64: 2, 8, 16>}, {pipeline_mode = #tpu.pipeline_mode<synchronous>, transform_indices = @transform_1, window_bounds = array<i64: 16, 96>}, {transform_indices = @transform_2, window_bounds = array<i64: 2, 8, 32>}]} {
    %c0 = arith.constant 0 : index
    %c0_0 = arith.constant 0 : index
    %c0_1 = arith.constant 0 : index
    %0 = vector.load %arg1[%c0, %c0_0, %c0_1] : memref<2x8x16xf32, #tpu.memory_space<vmem>>, vector<2x8x16xf32>
    %1 = vector.shape_cast %0 : vector<2x8x16xf32> to vector<16x16xf32>
    %c0_2 = arith.constant 0 : index
    %c0_3 = arith.constant 0 : index
    %2 = vector.load %arg2[%c0_2, %c0_3] : memref<16x96xf32, #tpu.memory_space<vmem>>, vector<16x96xf32>
    %cst = arith.constant dense<0.000000e+00> : vector<16x96xf32>
    %3 = tpu.matmul %1, %2, %cst {dimension_numbers = #tpu.dot_dimension_numbers<[1], [0], [0], [1], [0, 0, 1, 1], [], []>} : vector<16x16xf32>, vector<16x96xf32>, vector<16x96xf32> -> vector<16x96xf32>
    %4 = tpu.iota {dimensions = array<i32: 0>} : vector<8x8xi32>
    %5 = tpu.iota {dimensions = array<i32: 1>} : vector<8x8xi32>
    %6 = arith.cmpi sgt, %5, %4 : vector<8x8xi32>
    %cst_4 = arith.constant 0xFF800000 : f32
    %cst_5 = arith.constant 0.000000e+00 : f32
    %7 = vector.broadcast %cst_4 : f32 to vector<8x8xf32>
    %8 = vector.broadcast %cst_5 : f32 to vector<8x8xf32>
    %9 = arith.select %6, %7, %8 : vector<8x8xi1>, vector<8x8xf32>
    %10 = vector.extract_strided_slice %3 {offsets = [0, 0], sizes = [8, 96], strides = [1, 1]} : vector<16x96xf32> to vector<8x96xf32>
    %11 = vector.extract_strided_slice %10 {offsets = [0, 0], sizes = [8, 8], strides = [1, 1]} : vector<8x96xf32> to vector<8x8xf32>
    %12 = vector.extract_strided_slice %10 {offsets = [0, 32], sizes = [8, 8], strides = [1, 1]} : vector<8x96xf32> to vector<8x8xf32>
    %13 = vector.extract_strided_slice %10 {offsets = [0, 64], sizes = [8, 8], strides = [1, 1]} : vector<8x96xf32> to vector<8x8xf32>
    %cst_6 = arith.constant dense<0.000000e+00> : vector<8x8xf32>
    %14 = tpu.matmul %11, %12, %cst_6 {dimension_numbers = #tpu.dot_dimension_numbers<[1], [1], [0], [0], [0, 0, 1, 0], [], []>} : vector<8x8xf32>, vector<8x8xf32>, vector<8x8xf32> -> vector<8x8xf32>
    %15 = arith.addf %14, %9 : vector<8x8xf32>
    %cst_7 = arith.constant dense<0xFF800000> : vector<8xf32>
    %16 = vector.multi_reduction <maximumf>, %15, %cst_7 [1] : vector<8x8xf32> to vector<8xf32>
    %17 = vector.shape_cast %16 : vector<8xf32> to vector<8x1xf32>
    %18 = vector.broadcast %17 : vector<8x1xf32> to vector<8x8xf32>
    %19 = arith.subf %15, %18 : vector<8x8xf32>
    %20 = math.exp %19 : vector<8x8xf32>
    %cst_8 = arith.constant dense<0.000000e+00> : vector<8xf32>
    %21 = vector.multi_reduction <add>, %20, %cst_8 [1] : vector<8x8xf32> to vector<8xf32>
    %22 = vector.shape_cast %21 : vector<8xf32> to vector<8x1xf32>
    %23 = tpu.reciprocal %22 : vector<8x1xf32> -> vector<8x1xf32>
    %24 = vector.broadcast %23 : vector<8x1xf32> to vector<8x8xf32>
    %25 = arith.mulf %20, %24 : vector<8x8xf32>
    %cst_9 = arith.constant dense<0.000000e+00> : vector<8x8xf32>
    %26 = tpu.matmul %25, %13, %cst_9 {dimension_numbers = #tpu.dot_dimension_numbers<[1], [0], [0], [1], [0, 0, 1, 1], [], []>} : vector<8x8xf32>, vector<8x8xf32>, vector<8x8xf32> -> vector<8x8xf32>
    %c0_10 = arith.constant 0 : index
    %c0_11 = arith.constant 0 : index
    %c0_12 = arith.constant 0 : index
    %27 = vector.load %arg3[%c0_10, %c0_11, %c0_12] : memref<2x8x32xf32, #tpu.memory_space<vmem>>, vector<1x8x8xf32>
    %28 = vector.shape_cast %27 : vector<1x8x8xf32> to vector<8x8xf32>
    %29 = vector.shape_cast %26 : vector<8x8xf32> to vector<1x8x8xf32>
    tpu.vector_store %arg3[%c0_10, %c0_11, %c0_12], %29 {strides = array<i32>} : memref<2x8x32xf32, #tpu.memory_space<vmem>>, vector<1x8x8xf32>,
    %30 = vector.extract_strided_slice %10 {offsets = [0, 8], sizes = [8, 8], strides = [1, 1]} : vector<8x96xf32> to vector<8x8xf32>
    %31 = vector.extract_strided_slice %10 {offsets = [0, 40], sizes = [8, 8], strides = [1, 1]} : vector<8x96xf32> to vector<8x8xf32>
    %32 = vector.extract_strided_slice %10 {offsets = [0, 72], sizes = [8, 8], strides = [1, 1]} : vector<8x96xf32> to vector<8x8xf32>
    %cst_13 = arith.constant dense<0.000000e+00> : vector<8x8xf32>
    %33 = tpu.matmul %30, %31, %cst_13 {dimension_numbers = #tpu.dot_dimension_numbers<[1], [1], [0], [0], [0, 0, 1, 0], [], []>} : vector<8x8xf32>, vector<8x8xf32>, vector<8x8xf32> -> vector<8x8xf32>
    %34 = arith.addf %33, %9 : vector<8x8xf32>
    %cst_14 = arith.constant dense<0xFF800000> : vector<8xf32>
    %35 = vector.multi_reduction <maximumf>, %34, %cst_14 [1] : vector<8x8xf32> to vector<8xf32>
    %36 = vector.shape_cast %35 : vector<8xf32> to vector<8x1xf32>
    %37 = vector.broadcast %36 : vector<8x1xf32> to vector<8x8xf32>
    %38 = arith.subf %34, %37 : vector<8x8xf32>
    %39 = math.exp %38 : vector<8x8xf32>
    %cst_15 = arith.constant dense<0.000000e+00> : vector<8xf32>
    %40 = vector.multi_reduction <add>, %39, %cst_15 [1] : vector<8x8xf32> to vector<8xf32>
    %41 = vector.shape_cast %40 : vector<8xf32> to vector<8x1xf32>
    %42 = tpu.reciprocal %41 : vector<8x1xf32> -> vector<8x1xf32>
    %43 = vector.broadcast %42 : vector<8x1xf32> to vector<8x8xf32>
    %44 = arith.mulf %39, %43 : vector<8x8xf32>
    %cst_16 = arith.constant dense<0.000000e+00> : vector<8x8xf32>
    %45 = tpu.matmul %44, %32, %cst_16 {dimension_numbers = #tpu.dot_dimension_numbers<[1], [0], [0], [1], [0, 0, 1, 1], [], []>} : vector<8x8xf32>, vector<8x8xf32>, vector<8x8xf32> -> vector<8x8xf32>
    %c0_17 = arith.constant 0 : index
    %c0_18 = arith.constant 0 : index
    %c8 = arith.constant 8 : index
    %46 = vector.load %arg3[%c0_17, %c0_18, %c8] : memref<2x8x32xf32, #tpu.memory_space<vmem>>, vector<1x8x8xf32>
    %47 = vector.shape_cast %46 : vector<1x8x8xf32> to vector<8x8xf32>
    %48 = vector.shape_cast %45 : vector<8x8xf32> to vector<1x8x8xf32>
    tpu.vector_store %arg3[%c0_17, %c0_18, %c8], %48 {strides = array<i32>} : memref<2x8x32xf32, #tpu.memory_space<vmem>>, vector<1x8x8xf32>,
    %49 = vector.extract_strided_slice %10 {offsets = [0, 16], sizes = [8, 8], strides = [1, 1]} : vector<8x96xf32> to vector<8x8xf32>
    %50 = vector.extract_strided_slice %10 {offsets = [0, 48], sizes = [8, 8], strides = [1, 1]} : vector<8x96xf32> to vector<8x8xf32>
    %51 = vector.extract_strided_slice %10 {offsets = [0, 80], sizes = [8, 8], strides = [1, 1]} : vector<8x96xf32> to vector<8x8xf32>
    %cst_19 = arith.constant dense<0.000000e+00> : vector<8x8xf32>
    %52 = tpu.matmul %49, %50, %cst_19 {dimension_numbers = #tpu.dot_dimension_numbers<[1], [1], [0], [0], [0, 0, 1, 0], [], []>} : vector<8x8xf32>, vector<8x8xf32>, vector<8x8xf32> -> vector<8x8xf32>
    %53 = arith.addf %52, %9 : vector<8x8xf32>
    %cst_20 = arith.constant dense<0xFF800000> : vector<8xf32>
    %54 = vector.multi_reduction <maximumf>, %53, %cst_20 [1] : vector<8x8xf32> to vector<8xf32>
    %55 = vector.shape_cast %54 : vector<8xf32> to vector<8x1xf32>
    %56 = vector.broadcast %55 : vector<8x1xf32> to vector<8x8xf32>
    %57 = arith.subf %53, %56 : vector<8x8xf32>
    %58 = math.exp %57 : vector<8x8xf32>
    %cst_21 = arith.constant dense<0.000000e+00> : vector<8xf32>
    %59 = vector.multi_reduction <add>, %58, %cst_21 [1] : vector<8x8xf32> to vector<8xf32>
    %60 = vector.shape_cast %59 : vector<8xf32> to vector<8x1xf32>
    %61 = tpu.reciprocal %60 : vector<8x1xf32> -> vector<8x1xf32>
    %62 = vector.broadcast %61 : vector<8x1xf32> to vector<8x8xf32>
    %63 = arith.mulf %58, %62 : vector<8x8xf32>
    %cst_22 = arith.constant dense<0.000000e+00> : vector<8x8xf32>
    %64 = tpu.matmul %63, %51, %cst_22 {dimension_numbers = #tpu.dot_dimension_numbers<[1], [0], [0], [1], [0, 0, 1, 1], [], []>} : vector<8x8xf32>, vector<8x8xf32>, vector<8x8xf32> -> vector<8x8xf32>
    %c0_23 = arith.constant 0 : index
    %c0_24 = arith.constant 0 : index
    %c16 = arith.constant 16 : index
    %65 = vector.load %arg3[%c0_23, %c0_24, %c16] : memref<2x8x32xf32, #tpu.memory_space<vmem>>, vector<1x8x8xf32>
    %66 = vector.shape_cast %65 : vector<1x8x8xf32> to vector<8x8xf32>
    %67 = vector.shape_cast %64 : vector<8x8xf32> to vector<1x8x8xf32>
    tpu.vector_store %arg3[%c0_23, %c0_24, %c16], %67 {strides = array<i32>} : memref<2x8x32xf32, #tpu.memory_space<vmem>>, vector<1x8x8xf32>,
    %68 = vector.extract_strided_slice %10 {offsets = [0, 24], sizes = [8, 8], strides = [1, 1]} : vector<8x96xf32> to vector<8x8xf32>
    %69 = vector.extract_strided_slice %10 {offsets = [0, 56], sizes = [8, 8], strides = [1, 1]} : vector<8x96xf32> to vector<8x8xf32>
    %70 = vector.extract_strided_slice %10 {offsets = [0, 88], sizes = [8, 8], strides = [1, 1]} : vector<8x96xf32> to vector<8x8xf32>
    %cst_25 = arith.constant dense<0.000000e+00> : vector<8x8xf32>
    %71 = tpu.matmul %68, %69, %cst_25 {dimension_numbers = #tpu.dot_dimension_numbers<[1], [1], [0], [0], [0, 0, 1, 0], [], []>} : vector<8x8xf32>, vector<8x8xf32>, vector<8x8xf32> -> vector<8x8xf32>
    %72 = arith.addf %71, %9 : vector<8x8xf32>
    %cst_26 = arith.constant dense<0xFF800000> : vector<8xf32>
    %73 = vector.multi_reduction <maximumf>, %72, %cst_26 [1] : vector<8x8xf32> to vector<8xf32>
    %74 = vector.shape_cast %73 : vector<8xf32> to vector<8x1xf32>
    %75 = vector.broadcast %74 : vector<8x1xf32> to vector<8x8xf32>
    %76 = arith.subf %72, %75 : vector<8x8xf32>
    %77 = math.exp %76 : vector<8x8xf32>
    %cst_27 = arith.constant dense<0.000000e+00> : vector<8xf32>
    %78 = vector.multi_reduction <add>, %77, %cst_27 [1] : vector<8x8xf32> to vector<8xf32>
    %79 = vector.shape_cast %78 : vector<8xf32> to vector<8x1xf32>
    %80 = tpu.reciprocal %79 : vector<8x1xf32> -> vector<8x1xf32>
    %81 = vector.broadcast %80 : vector<8x1xf32> to vector<8x8xf32>
    %82 = arith.mulf %77, %81 : vector<8x8xf32>
    %cst_28 = arith.constant dense<0.000000e+00> : vector<8x8xf32>
    %83 = tpu.matmul %82, %70, %cst_28 {dimension_numbers = #tpu.dot_dimension_numbers<[1], [0], [0], [1], [0, 0, 1, 1], [], []>} : vector<8x8xf32>, vector<8x8xf32>, vector<8x8xf32> -> vector<8x8xf32>
    %c0_29 = arith.constant 0 : index
    %c0_30 = arith.constant 0 : index
    %c24 = arith.constant 24 : index
    %84 = vector.load %arg3[%c0_29, %c0_30, %c24] : memref<2x8x32xf32, #tpu.memory_space<vmem>>, vector<1x8x8xf32>
    %85 = vector.shape_cast %84 : vector<1x8x8xf32> to vector<8x8xf32>
    %86 = vector.shape_cast %83 : vector<8x8xf32> to vector<1x8x8xf32>
    tpu.vector_store %arg3[%c0_29, %c0_30, %c24], %86 {strides = array<i32>} : memref<2x8x32xf32, #tpu.memory_space<vmem>>, vector<1x8x8xf32>,
    %87 = vector.extract_strided_slice %3 {offsets = [8, 0], sizes = [8, 96], strides = [1, 1]} : vector<16x96xf32> to vector<8x96xf32>
    %88 = vector.extract_strided_slice %87 {offsets = [0, 0], sizes = [8, 8], strides = [1, 1]} : vector<8x96xf32> to vector<8x8xf32>
    %89 = vector.extract_strided_slice %87 {offsets = [0, 32], sizes = [8, 8], strides = [1, 1]} : vector<8x96xf32> to vector<8x8xf32>
    %90 = vector.extract_strided_slice %87 {offsets = [0, 64], sizes = [8, 8], strides = [1, 1]} : vector<8x96xf32> to vector<8x8xf32>
    %cst_31 = arith.constant dense<0.000000e+00> : vector<8x8xf32>
    %91 = tpu.matmul %88, %89, %cst_31 {dimension_numbers = #tpu.dot_dimension_numbers<[1], [1], [0], [0], [0, 0, 1, 0], [], []>} : vector<8x8xf32>, vector<8x8xf32>, vector<8x8xf32> -> vector<8x8xf32>
    %92 = arith.addf %91, %9 : vector<8x8xf32>
    %cst_32 = arith.constant dense<0xFF800000> : vector<8xf32>
    %93 = vector.multi_reduction <maximumf>, %92, %cst_32 [1] : vector<8x8xf32> to vector<8xf32>
    %94 = vector.shape_cast %93 : vector<8xf32> to vector<8x1xf32>
    %95 = vector.broadcast %94 : vector<8x1xf32> to vector<8x8xf32>
    %96 = arith.subf %92, %95 : vector<8x8xf32>
    %97 = math.exp %96 : vector<8x8xf32>
    %cst_33 = arith.constant dense<0.000000e+00> : vector<8xf32>
    %98 = vector.multi_reduction <add>, %97, %cst_33 [1] : vector<8x8xf32> to vector<8xf32>
    %99 = vector.shape_cast %98 : vector<8xf32> to vector<8x1xf32>
    %100 = tpu.reciprocal %99 : vector<8x1xf32> -> vector<8x1xf32>
    %101 = vector.broadcast %100 : vector<8x1xf32> to vector<8x8xf32>
    %102 = arith.mulf %97, %101 : vector<8x8xf32>
    %cst_34 = arith.constant dense<0.000000e+00> : vector<8x8xf32>
    %103 = tpu.matmul %102, %90, %cst_34 {dimension_numbers = #tpu.dot_dimension_numbers<[1], [0], [0], [1], [0, 0, 1, 1], [], []>} : vector<8x8xf32>, vector<8x8xf32>, vector<8x8xf32> -> vector<8x8xf32>
    %c1 = arith.constant 1 : index
    %c0_35 = arith.constant 0 : index
    %c0_36 = arith.constant 0 : index
    %104 = vector.load %arg3[%c1, %c0_35, %c0_36] : memref<2x8x32xf32, #tpu.memory_space<vmem>>, vector<1x8x8xf32>
    %105 = vector.shape_cast %104 : vector<1x8x8xf32> to vector<8x8xf32>
    %106 = vector.shape_cast %103 : vector<8x8xf32> to vector<1x8x8xf32>
    tpu.vector_store %arg3[%c1, %c0_35, %c0_36], %106 {strides = array<i32>} : memref<2x8x32xf32, #tpu.memory_space<vmem>>, vector<1x8x8xf32>,
    %107 = vector.extract_strided_slice %87 {offsets = [0, 8], sizes = [8, 8], strides = [1, 1]} : vector<8x96xf32> to vector<8x8xf32>
    %108 = vector.extract_strided_slice %87 {offsets = [0, 40], sizes = [8, 8], strides = [1, 1]} : vector<8x96xf32> to vector<8x8xf32>
    %109 = vector.extract_strided_slice %87 {offsets = [0, 72], sizes = [8, 8], strides = [1, 1]} : vector<8x96xf32> to vector<8x8xf32>
    %cst_37 = arith.constant dense<0.000000e+00> : vector<8x8xf32>
    %110 = tpu.matmul %107, %108, %cst_37 {dimension_numbers = #tpu.dot_dimension_numbers<[1], [1], [0], [0], [0, 0, 1, 0], [], []>} : vector<8x8xf32>, vector<8x8xf32>, vector<8x8xf32> -> vector<8x8xf32>
    %111 = arith.addf %110, %9 : vector<8x8xf32>
    %cst_38 = arith.constant dense<0xFF800000> : vector<8xf32>
    %112 = vector.multi_reduction <maximumf>, %111, %cst_38 [1] : vector<8x8xf32> to vector<8xf32>
    %113 = vector.shape_cast %112 : vector<8xf32> to vector<8x1xf32>
    %114 = vector.broadcast %113 : vector<8x1xf32> to vector<8x8xf32>
    %115 = arith.subf %111, %114 : vector<8x8xf32>
    %116 = math.exp %115 : vector<8x8xf32>
    %cst_39 = arith.constant dense<0.000000e+00> : vector<8xf32>
    %117 = vector.multi_reduction <add>, %116, %cst_39 [1] : vector<8x8xf32> to vector<8xf32>
    %118 = vector.shape_cast %117 : vector<8xf32> to vector<8x1xf32>
    %119 = tpu.reciprocal %118 : vector<8x1xf32> -> vector<8x1xf32>
    %120 = vector.broadcast %119 : vector<8x1xf32> to vector<8x8xf32>
    %121 = arith.mulf %116, %120 : vector<8x8xf32>
    %cst_40 = arith.constant dense<0.000000e+00> : vector<8x8xf32>
    %122 = tpu.matmul %121, %109, %cst_40 {dimension_numbers = #tpu.dot_dimension_numbers<[1], [0], [0], [1], [0, 0, 1, 1], [], []>} : vector<8x8xf32>, vector<8x8xf32>, vector<8x8xf32> -> vector<8x8xf32>
    %c1_41 = arith.constant 1 : index
    %c0_42 = arith.constant 0 : index
    %c8_43 = arith.constant 8 : index
    %123 = vector.load %arg3[%c1_41, %c0_42, %c8_43] : memref<2x8x32xf32, #tpu.memory_space<vmem>>, vector<1x8x8xf32>
    %124 = vector.shape_cast %123 : vector<1x8x8xf32> to vector<8x8xf32>
    %125 = vector.shape_cast %122 : vector<8x8xf32> to vector<1x8x8xf32>
    tpu.vector_store %arg3[%c1_41, %c0_42, %c8_43], %125 {strides = array<i32>} : memref<2x8x32xf32, #tpu.memory_space<vmem>>, vector<1x8x8xf32>,
    %126 = vector.extract_strided_slice %87 {offsets = [0, 16], sizes = [8, 8], strides = [1, 1]} : vector<8x96xf32> to vector<8x8xf32>
    %127 = vector.extract_strided_slice %87 {offsets = [0, 48], sizes = [8, 8], strides = [1, 1]} : vector<8x96xf32> to vector<8x8xf32>
    %128 = vector.extract_strided_slice %87 {offsets = [0, 80], sizes = [8, 8], strides = [1, 1]} : vector<8x96xf32> to vector<8x8xf32>
    %cst_44 = arith.constant dense<0.000000e+00> : vector<8x8xf32>
    %129 = tpu.matmul %126, %127, %cst_44 {dimension_numbers = #tpu.dot_dimension_numbers<[1], [1], [0], [0], [0, 0, 1, 0], [], []>} : vector<8x8xf32>, vector<8x8xf32>, vector<8x8xf32> -> vector<8x8xf32>
    %130 = arith.addf %129, %9 : vector<8x8xf32>
    %cst_45 = arith.constant dense<0xFF800000> : vector<8xf32>
    %131 = vector.multi_reduction <maximumf>, %130, %cst_45 [1] : vector<8x8xf32> to vector<8xf32>
    %132 = vector.shape_cast %131 : vector<8xf32> to vector<8x1xf32>
    %133 = vector.broadcast %132 : vector<8x1xf32> to vector<8x8xf32>
    %134 = arith.subf %130, %133 : vector<8x8xf32>
    %135 = math.exp %134 : vector<8x8xf32>
    %cst_46 = arith.constant dense<0.000000e+00> : vector<8xf32>
    %136 = vector.multi_reduction <add>, %135, %cst_46 [1] : vector<8x8xf32> to vector<8xf32>
    %137 = vector.shape_cast %136 : vector<8xf32> to vector<8x1xf32>
    %138 = tpu.reciprocal %137 : vector<8x1xf32> -> vector<8x1xf32>
    %139 = vector.broadcast %138 : vector<8x1xf32> to vector<8x8xf32>
    %140 = arith.mulf %135, %139 : vector<8x8xf32>
    %cst_47 = arith.constant dense<0.000000e+00> : vector<8x8xf32>
    %141 = tpu.matmul %140, %128, %cst_47 {dimension_numbers = #tpu.dot_dimension_numbers<[1], [0], [0], [1], [0, 0, 1, 1], [], []>} : vector<8x8xf32>, vector<8x8xf32>, vector<8x8xf32> -> vector<8x8xf32>
    %c1_48 = arith.constant 1 : index
    %c0_49 = arith.constant 0 : index
    %c16_50 = arith.constant 16 : index
    %142 = vector.load %arg3[%c1_48, %c0_49, %c16_50] : memref<2x8x32xf32, #tpu.memory_space<vmem>>, vector<1x8x8xf32>
    %143 = vector.shape_cast %142 : vector<1x8x8xf32> to vector<8x8xf32>
    %144 = vector.shape_cast %141 : vector<8x8xf32> to vector<1x8x8xf32>
    tpu.vector_store %arg3[%c1_48, %c0_49, %c16_50], %144 {strides = array<i32>} : memref<2x8x32xf32, #tpu.memory_space<vmem>>, vector<1x8x8xf32>,
    %145 = vector.extract_strided_slice %87 {offsets = [0, 24], sizes = [8, 8], strides = [1, 1]} : vector<8x96xf32> to vector<8x8xf32>
    %146 = vector.extract_strided_slice %87 {offsets = [0, 56], sizes = [8, 8], strides = [1, 1]} : vector<8x96xf32> to vector<8x8xf32>
    %147 = vector.extract_strided_slice %87 {offsets = [0, 88], sizes = [8, 8], strides = [1, 1]} : vector<8x96xf32> to vector<8x8xf32>
    %cst_51 = arith.constant dense<0.000000e+00> : vector<8x8xf32>
    %148 = tpu.matmul %145, %146, %cst_51 {dimension_numbers = #tpu.dot_dimension_numbers<[1], [1], [0], [0], [0, 0, 1, 0], [], []>} : vector<8x8xf32>, vector<8x8xf32>, vector<8x8xf32> -> vector<8x8xf32>
    %149 = arith.addf %148, %9 : vector<8x8xf32>
    %cst_52 = arith.constant dense<0xFF800000> : vector<8xf32>
    %150 = vector.multi_reduction <maximumf>, %149, %cst_52 [1] : vector<8x8xf32> to vector<8xf32>
    %151 = vector.shape_cast %150 : vector<8xf32> to vector<8x1xf32>
    %152 = vector.broadcast %151 : vector<8x1xf32> to vector<8x8xf32>
    %153 = arith.subf %149, %152 : vector<8x8xf32>
    %154 = math.exp %153 : vector<8x8xf32>
    %cst_53 = arith.constant dense<0.000000e+00> : vector<8xf32>
    %155 = vector.multi_reduction <add>, %154, %cst_53 [1] : vector<8x8xf32> to vector<8xf32>
    %156 = vector.shape_cast %155 : vector<8xf32> to vector<8x1xf32>
    %157 = tpu.reciprocal %156 : vector<8x1xf32> -> vector<8x1xf32>
    %158 = vector.broadcast %157 : vector<8x1xf32> to vector<8x8xf32>
    %159 = arith.mulf %154, %158 : vector<8x8xf32>
    %cst_54 = arith.constant dense<0.000000e+00> : vector<8x8xf32>
    %160 = tpu.matmul %159, %147, %cst_54 {dimension_numbers = #tpu.dot_dimension_numbers<[1], [0], [0], [1], [0, 0, 1, 1], [], []>} : vector<8x8xf32>, vector<8x8xf32>, vector<8x8xf32> -> vector<8x8xf32>
    %c1_55 = arith.constant 1 : index
    %c0_56 = arith.constant 0 : index
    %c24_57 = arith.constant 24 : index
    %161 = vector.load %arg3[%c1_55, %c0_56, %c24_57] : memref<2x8x32xf32, #tpu.memory_space<vmem>>, vector<1x8x8xf32>
    %162 = vector.shape_cast %161 : vector<1x8x8xf32> to vector<8x8xf32>
    %163 = vector.shape_cast %160 : vector<8x8xf32> to vector<1x8x8xf32>
    tpu.vector_store %arg3[%c1_55, %c0_56, %c24_57], %163 {strides = array<i32>} : memref<2x8x32xf32, #tpu.memory_space<vmem>>, vector<1x8x8xf32>,
    return
  }
  func.func @transform_0(%arg0: i32) -> (i32, i32, i32) {
    %c0_i32 = arith.constant 0 : i32
    %c0_i32_0 = arith.constant 0 : i32
    %c0_i32_1 = arith.constant 0 : i32
    return %arg0, %c0_i32, %c0_i32_0 : i32, i32, i32
  }
  func.func @transform_1(%arg0: i32) -> (i32, i32) {
    %c0_i32 = arith.constant 0 : i32
    %c0_i32_0 = arith.constant 0 : i32
    %c0_i32_1 = arith.constant 0 : i32
    return %c0_i32, %c0_i32_0 : i32, i32
  }
  func.func @transform_2(%arg0: i32) -> (i32, i32, i32) {
    %c0_i32 = arith.constant 0 : i32
    %c0_i32_0 = arith.constant 0 : i32
    %c0_i32_1 = arith.constant 0 : i32
    return %arg0, %c0_i32, %c0_i32_0 : i32, i32, i32
  }
}

</mosaic_0001>

<llo_original>
// kernel: tpu_custom_call.1
$region0: #{tpu_custom_call.1}
  #allocation0 [shape = 'u32[]', space=smem, size = 0x4, offset = 0x4, fixed_abs, tag = 'smem constant byte address 0x4 - core index']
  #allocation1 [shape = 'u32[144,128]{1,0:T(1,128)}', space=vmem, size = 0x12000, scoped, tag = 'internal scratch']
  %s0 = inlined_call_operand.hbm [shape: f32[2,8,16], index: 0, kind: input, shape index: {}]
  %s1 = inlined_call_operand.hbm [shape: f32[16,96], index: 1, kind: input, shape index: {}]
  %s2 = inlined_call_operand.hbm [shape: f32[2,8,32], index: 2, kind: output, shape index: {}]
  %s3 = sld [smem:[#allocation0]]
  $region26: #{tpu_custom_call.1} parent=0
    _
  %s5 = ssub.s32 1, %s3
  %s6 = scalar_select 0, %s5, %s3
  $region1: #{tpu_custom_call.1} parent=0
    #allocation2 [shape = 'u8[8192]{0}', space=vmem, size = 0x2000, scoped, tag = 'input window, operand 0, single buffered']
    #allocation3 [shape = 's32[1]{0}', space=sflag, size = 0x4, scoped, tag = 'scoped memory for tpu_custom_call.1']
    #allocation4 [shape = 's32[1]{0}', space=sflag, size = 0x4, scoped, tag = 'scoped memory for tpu_custom_call.1']
    #allocation5 [shape = 'u8[8192]{0}', space=vmem, size = 0x2000, scoped, tag = 'input window, operand 1, single buffered']
    #allocation6 [shape = 's32[1]{0}', space=sflag, size = 0x4, scoped, tag = 'scoped memory for tpu_custom_call.1']
    #allocation7 [shape = 'u8[8192]{0}', space=vmem, size = 0x2000, scoped, tag = 'output window, operand 0, single buffered']
    %7 = vsyncpa [#allocation3], 0
    %8 = vsyncpa [#allocation6], 0
    %9 = vsyncpa [#allocation4], 0
    // Predicated region
    $region2: #{tpu_custom_call.1} parent=1 // pred_check
      _
    $region3: #{tpu_custom_call.1} parent=1 // pred_check_branch
      %11 = sbr.rel (0) target = $region5
    $region4: #{tpu_custom_call.1} parent=1 // pred_region
      %s13 = ssub.s32 256, 256
      %14 = vsyncadd [#allocation3], %s13
      %s15 = sshll.u32 [#allocation2], 4
      %s16 = int_to_ptr.vmem [resolvable:$true] %s15
      %21 = dma.hbm_to_vmem [thread:$0]  %s0, 256, %s16, [#allocation3], 128, 128, 8
    $region5: #{tpu_custom_call.1} parent=1 // pred_fallthru
      _
    // Predicated region
    $region6: #{tpu_custom_call.1} parent=1 // pred_check
      _
    $region7: #{tpu_custom_call.1} parent=1 // pred_check_branch
      %23 = sbr.rel (0) target = $region9
    $region8: #{tpu_custom_call.1} parent=1 // pred_region
      %s25 = ssub.s32 256, 256
      %26 = vsyncadd [#allocation6], %s25
      %s27 = sshll.u32 [#allocation5], 4
      %s28 = int_to_ptr.vmem [resolvable:$true] %s27
      %33 = dma.hbm_to_vmem [thread:$0]  %s1, 256, %s28, [#allocation6], 128, 128, 8
    $region9: #{tpu_custom_call.1} parent=1 // pred_fallthru
      _
    // Predicated region
    $region10: #{tpu_custom_call.1} parent=1 // pred_check
      _
    $region11: #{tpu_custom_call.1} parent=1 // pred_check_branch
      %35 = sbr.rel (0) target = $region13
    $region12: #{tpu_custom_call.1} parent=1 // pred_region
      %36 = dma.done [#allocation3], 256
    $region13: #{tpu_custom_call.1} parent=1 // pred_fallthru
      _
    // Predicated region
    $region14: #{tpu_custom_call.1} parent=1 // pred_check
      _
    $region15: #{tpu_custom_call.1} parent=1 // pred_check_branch
      %38 = sbr.rel (0) target = $region17
    $region16: #{tpu_custom_call.1} parent=1 // pred_region
      %39 = dma.done [#allocation6], 256
    $region17: #{tpu_custom_call.1} parent=1 // pred_fallthru
      _
    %v40 = vld [vmem:[#allocation2] sm:$0xff]
    %v41 = vld [vmem:[#allocation2 + $0x8] sm:$0xff]
    %v42 = vld [vmem:[#allocation5] sm:$0xff]
    %v43 = vld [vmem:[#allocation5 + $0x8] sm:$0xff]
    %vm44 = vcmask 130048
    %v46 = vsel %vm44, %v40, 0
    %v49 = vsel %vm44, %v41, 0
    %51 = vmatprep.subr.mxu0 0.0
    %52 = vmatpush1.msra.mxu0 %v42
    %53 = vmatprep.subr.mxu0 0.0
    %54 = vmatpush1.msra.mxu0 %v43
    %55 = vmatprep.subr.mxu0 0.0
    %56 = vmatpush1.msra.mxu0 0.0
    %57 = vmatprep.subr.mxu0 0.0
    %58 = vmatpush1.msra.mxu0 0.0
    %59 = vmatprep.subr.mxu0 0.0
    %60 = vmatpush1.msra.mxu0 0.0
    %61 = vmatprep.subr.mxu0 0.0
    %62 = vmatpush1.msra.mxu0 0.0
    %63 = vmatprep.subr.mxu0 0.0
    %64 = vmatpush1.msra.mxu0 0.0
    %65 = vmatprep.subr.mxu0 0.0
    %66 = vmatpush1.msra.mxu0 0.0
    %67 = vmatprep.subr.mxu0 0.0
    %68 = vmatpush1.msra.mxu0 0.0
    %69 = vmatprep.subr.mxu0 0.0
    %70 = vmatpush1.msra.mxu0 0.0
    %71 = vmatprep.subr.mxu0 0.0
    %72 = vmatpush1.msra.mxu0 0.0
    %73 = vmatprep.subr.mxu0 0.0
    %74 = vmatpush1.msra.mxu0 0.0
    %75 = vmatprep.subr.mxu0 0.0
    %76 = vmatpush1.msra.mxu0 0.0
    %77 = vmatprep.subr.mxu0 0.0
    %78 = vmatpush1.msra.mxu0 0.0
    %79 = vmatprep.subr.mxu0 0.0
    %80 = vmatpush1.msra.mxu0 0.0
    %81 = vmatprep.subr.mxu0 0.0
    %82 = vmatpush1.msra.mxu0 0.0
    %83 = vmatprep.subr.mxu0 0.0
    %84 = vmatpush1.msra.mxu0 0.0
    %85 = vmatprep.subr.mxu0 0.0
    %86 = vmatpush1.msra.mxu0 0.0
    %87 = vmatprep.subr.mxu0 0.0
    %88 = vmatpush1.msra.mxu0 0.0
    %89 = vmatprep.subr.mxu0 0.0
    %90 = vmatpush1.msra.mxu0 0.0
    %91 = vmatprep.subr.mxu0 0.0
    %92 = vmatpush1.msra.mxu0 0.0
    %93 = vmatprep.subr.mxu0 0.0
    %94 = vmatpush1.msra.mxu0 0.0
    %95 = vmatprep.subr.mxu0 0.0
    %96 = vmatpush1.msra.mxu0 0.0
    %97 = vmatprep.subr.mxu0 0.0
    %98 = vmatpush1.msra.mxu0 0.0
    %99 = vmatprep.subr.mxu0 0.0
    %100 = vmatpush1.msra.mxu0 0.0
    %101 = vmatprep.subr.mxu0 0.0
    %102 = vmatpush1.msra.mxu0 0.0
    %103 = vmatprep.subr.mxu0 0.0
    %104 = vmatpush1.msra.mxu0 0.0
    %105 = vmatprep.subr.mxu0 0.0
    %106 = vmatpush1.msra.mxu0 0.0
    %107 = vmatprep.subr.mxu0 0.0
    %108 = vmatpush1.msra.mxu0 0.0
    %109 = vmatprep.subr.mxu0 0.0
    %110 = vmatpush1.msra.mxu0 0.0
    %111 = vmatprep.subr.mxu0 0.0
    %112 = vmatpush1.msra.mxu0 0.0
    %113 = vmatprep.subr.mxu0 0.0
    %114 = vmatpush1.msra.mxu0 0.0
    %115 = vmatprep.mubr.f32.mxu0 0.0
    %116 = vmatmul.mubr.f32.gmra.mrb[0].mxu0 %v46
    %v117 = vpop.f32.mrb[0].mxu0
    %v118 = vadd.f32 0.0, %v117
    %v119 = vpop.f32.mrb[0].mxu0
    %120 = vmatprep.mubr.f32.mxu0 0.0
    %121 = vmatmul.mubr.f32.gmra.mrb[0].mxu0 %v49
    %v122 = vpop.f32.mrb[0].mxu0
    %v123 = vadd.f32 0.0, %v122
    %v124 = vpop.f32.mrb[0].mxu0
    %125 = vdwg.mxu0
    %v126 = vlaneseq
    %v127 = vshrl.u32 %v126, 7
    %v128 = vlaneseq
    %v129 = vand.u32 %v128, 127
    %vm130 = vcmp.gt.s32.totalorder %v129, %v127
    %v131 = vsel %vm130, -inf, 0.0
    %133 = vrot.lane.b32.xlu0 %v118, 96
    %v134 = vpop.permute.xlu0 %133
    %vm135 = vcmask 64512
    %v136 = vsel %vm135, %v118, 0
    %v138 = vsel %vm135, %v134, 0
    %140 = vmatprep.subr.mxu0 0.0
    %141 = vmatpush1.xpose.msra.mxu0 %v138
    %142 = vmatprep.subr.mxu0 0.0
    %143 = vmatpush1.xpose.msra.mxu0 0.0
    %144 = vmatprep.subr.mxu0 0.0
    %145 = vmatpush1.xpose.msra.mxu0 0.0
    %146 = vmatprep.subr.mxu0 0.0
    %147 = vmatpush1.xpose.msra.mxu0 0.0
    %148 = vmatprep.subr.mxu0 0.0
    %149 = vmatpush1.xpose.msra.mxu0 0.0
    %150 = vmatprep.subr.mxu0 0.0
    %151 = vmatpush1.xpose.msra.mxu0 0.0
    %152 = vmatprep.subr.mxu0 0.0
    %153 = vmatpush1.xpose.msra.mxu0 0.0
    %154 = vmatprep.subr.mxu0 0.0
    %155 = vmatpush1.xpose.msra.mxu0 0.0
    %156 = vmatprep.subr.mxu0 0.0
    %157 = vmatpush1.xpose.msra.mxu0 0.0
    %158 = vmatprep.subr.mxu0 0.0
    %159 = vmatpush1.xpose.msra.mxu0 0.0
    %160 = vmatprep.subr.mxu0 0.0
    %161 = vmatpush1.xpose.msra.mxu0 0.0
    %162 = vmatprep.subr.mxu0 0.0
    %163 = vmatpush1.xpose.msra.mxu0 0.0
    %164 = vmatprep.subr.mxu0 0.0
    %165 = vmatpush1.xpose.msra.mxu0 0.0
    %166 = vmatprep.subr.mxu0 0.0
    %167 = vmatpush1.xpose.msra.mxu0 0.0
    %168 = vmatprep.subr.mxu0 0.0
    %169 = vmatpush1.xpose.msra.mxu0 0.0
    %170 = vmatprep.subr.mxu0 0.0
    %171 = vmatpush1.xpose.msra.mxu0 0.0
    %172 = vmatprep.subr.mxu0 0.0
    %173 = vmatpush1.xpose.msra.mxu0 0.0
    %174 = vmatprep.subr.mxu0 0.0
    %175 = vmatpush1.xpose.msra.mxu0 0.0
    %176 = vmatprep.subr.mxu0 0.0
    %177 = vmatpush1.xpose.msra.mxu0 0.0
    %178 = vmatprep.subr.mxu0 0.0
    %179 = vmatpush1.xpose.msra.mxu0 0.0
    %180 = vmatprep.subr.mxu0 0.0
    %181 = vmatpush1.xpose.msra.mxu0 0.0
    %182 = vmatprep.subr.mxu0 0.0
    %183 = vmatpush1.xpose.msra.mxu0 0.0
    %184 = vmatprep.subr.mxu0 0.0
    %185 = vmatpush1.xpose.msra.mxu0 0.0
    %186 = vmatprep.subr.mxu0 0.0
    %187 = vmatpush1.xpose.msra.mxu0 0.0
    %188 = vmatprep.subr.mxu0 0.0
    %189 = vmatpush1.xpose.msra.mxu0 0.0
    %190 = vmatprep.subr.mxu0 0.0
    %191 = vmatpush1.xpose.msra.mxu0 0.0
    %192 = vmatprep.subr.mxu0 0.0
    %193 = vmatpush1.xpose.msra.mxu0 0.0
    %194 = vmatprep.subr.mxu0 0.0
    %195 = vmatpush1.xpose.msra.mxu0 0.0
    %196 = vmatprep.subr.mxu0 0.0
    %197 = vmatpush1.xpose.msra.mxu0 0.0
    %198 = vmatprep.subr.mxu0 0.0
    %199 = vmatpush1.xpose.msra.mxu0 0.0
    %200 = vmatprep.subr.mxu0 0.0
    %201 = vmatpush1.xpose.msra.mxu0 0.0
    %202 = vmatprep.subr.mxu0 0.0
    %203 = vmatpush1.xpose.msra.mxu0 0.0
    %204 = vmatprep.mubr.f32.mxu0 0.0
    %205 = vmatmul.mubr.f32.gmra.mrb[0].mxu0 %v136
    %v206 = vpop.f32.mrb[0].mxu0
    %v207 = vadd.f32 %v131, %v206
    %v208 = vpop.f32.mrb[0].mxu0
    %209 = vdwg.mxu0
    %v210 = vsel %vm135, %v207, -inf
    %211 = vmax.xlane.f32.xlu0 %v210
    %v212 = vpop.xlane.xlu0 %211
    %v213 = vsub.f32 %v207, %v212
    %v214 = vmul.f32 %v213, 1.442695
    %v215 = vpow.pop %v214
    %v216 = vsel %vm135, %v215, 0.0
    %217 = vadd.xlane.f32.xlu0 %v216
    %v218 = vpop.xlane.xlu0 %217
    %v219 = vrcp.pop %v218
    %v220 = vmul.f32 %v215, %v219
    %221 = vrot.lane.b32.xlu0 %v118, 64
    %v222 = vpop.permute.xlu0 %221
    %v225 = vsel %vm135, %v220, 0
    %227 = vmatprep.subr.mxu0 0.0
    %228 = vmatpush1.msra.mxu0 %v222
    %229 = vmatprep.subr.mxu0 0.0
    %230 = vmatpush1.msra.mxu0 0.0
    %231 = vmatprep.subr.mxu0 0.0
    %232 = vmatpush1.msra.mxu0 0.0
    %233 = vmatprep.subr.mxu0 0.0
    %234 = vmatpush1.msra.mxu0 0.0
    %235 = vmatprep.subr.mxu0 0.0
    %236 = vmatpush1.msra.mxu0 0.0
    %237 = vmatprep.subr.mxu0 0.0
    %238 = vmatpush1.msra.mxu0 0.0
    %239 = vmatprep.subr.mxu0 0.0
    %240 = vmatpush1.msra.mxu0 0.0
    %241 = vmatprep.subr.mxu0 0.0
    %242 = vmatpush1.msra.mxu0 0.0
    %243 = vmatprep.subr.mxu0 0.0
    %244 = vmatpush1.msra.mxu0 0.0
    %245 = vmatprep.subr.mxu0 0.0
    %246 = vmatpush1.msra.mxu0 0.0
    %247 = vmatprep.subr.mxu0 0.0
    %248 = vmatpush1.msra.mxu0 0.0
    %249 = vmatprep.subr.mxu0 0.0
    %250 = vmatpush1.msra.mxu0 0.0
    %251 = vmatprep.subr.mxu0 0.0
    %252 = vmatpush1.msra.mxu0 0.0
    %253 = vmatprep.subr.mxu0 0.0
    %254 = vmatpush1.msra.mxu0 0.0
    %255 = vmatprep.subr.mxu0 0.0
    %256 = vmatpush1.msra.mxu0 0.0
    %257 = vmatprep.subr.mxu0 0.0
    %258 = vmatpush1.msra.mxu0 0.0
    %259 = vmatprep.subr.mxu0 0.0
    %260 = vmatpush1.msra.mxu0 0.0
    %261 = vmatprep.subr.mxu0 0.0
    %262 = vmatpush1.msra.mxu0 0.0
    %263 = vmatprep.subr.mxu0 0.0
    %264 = vmatpush1.msra.mxu0 0.0
    %265 = vmatprep.subr.mxu0 0.0
    %266 = vmatpush1.msra.mxu0 0.0
    %267 = vmatprep.subr.mxu0 0.0
    %268 = vmatpush1.msra.mxu0 0.0
    %269 = vmatprep.subr.mxu0 0.0
    %270 = vmatpush1.msra.mxu0 0.0
    %271 = vmatprep.subr.mxu0 0.0
    %272 = vmatpush1.msra.mxu0 0.0
    %273 = vmatprep.subr.mxu0 0.0
    %274 = vmatpush1.msra.mxu0 0.0
    %275 = vmatprep.subr.mxu0 0.0
    %276 = vmatpush1.msra.mxu0 0.0
    %277 = vmatprep.subr.mxu0 0.0
    %278 = vmatpush1.msra.mxu0 0.0
    %279 = vmatprep.subr.mxu0 0.0
    %280 = vmatpush1.msra.mxu0 0.0
    %281 = vmatprep.subr.mxu0 0.0
    %282 = vmatpush1.msra.mxu0 0.0
    %283 = vmatprep.subr.mxu0 0.0
    %284 = vmatpush1.msra.mxu0 0.0
    %285 = vmatprep.subr.mxu0 0.0
    %286 = vmatpush1.msra.mxu0 0.0
    %287 = vmatprep.subr.mxu0 0.0
    %288 = vmatpush1.msra.mxu0 0.0
    %289 = vmatprep.subr.mxu0 0.0
    %290 = vmatpush1.msra.mxu0 0.0
    %291 = vmatprep.mubr.f32.mxu0 0.0
    %292 = vmatmul.mubr.f32.gmra.mrb[0].mxu0 %v225
    %v293 = vpop.f32.mrb[0].mxu0
    %v294 = vadd.f32 0.0, %v293
    %v295 = vpop.f32.mrb[0].mxu0
    %296 = vdwg.mxu0
    %297 = vst.msk [vmem:[#allocation7] sm:$0xff] %vm135, %v294
    %298 = vrot.lane.b32.xlu0 %v118, 120
    %v299 = vpop.permute.xlu0 %298
    %300 = vrot.lane.b32.xlu0 %v118, 88
    %v301 = vpop.permute.xlu0 %300
    %v302 = vsel %vm135, %v299, 0
    %v304 = vsel %vm135, %v301, 0
    %306 = vmatprep.subr.mxu0 0.0
    %307 = vmatpush1.xpose.msra.mxu0 %v304
    %308 = vmatprep.subr.mxu0 0.0
    %309 = vmatpush1.xpose.msra.mxu0 0.0
    %310 = vmatprep.subr.mxu0 0.0
    %311 = vmatpush1.xpose.msra.mxu0 0.0
    %312 = vmatprep.subr.mxu0 0.0
    %313 = vmatpush1.xpose.msra.mxu0 0.0
    %314 = vmatprep.subr.mxu0 0.0
    %315 = vmatpush1.xpose.msra.mxu0 0.0
    %316 = vmatprep.subr.mxu0 0.0
    %317 = vmatpush1.xpose.msra.mxu0 0.0
    %318 = vmatprep.subr.mxu0 0.0
    %319 = vmatpush1.xpose.msra.mxu0 0.0
    %320 = vmatprep.subr.mxu0 0.0
    %321 = vmatpush1.xpose.msra.mxu0 0.0
    %322 = vmatprep.subr.mxu0 0.0
    %323 = vmatpush1.xpose.msra.mxu0 0.0
    %324 = vmatprep.subr.mxu0 0.0
    %325 = vmatpush1.xpose.msra.mxu0 0.0
    %326 = vmatprep.subr.mxu0 0.0
    %327 = vmatpush1.xpose.msra.mxu0 0.0
    %328 = vmatprep.subr.mxu0 0.0
    %329 = vmatpush1.xpose.msra.mxu0 0.0
    %330 = vmatprep.subr.mxu0 0.0
    %331 = vmatpush1.xpose.msra.mxu0 0.0
    %332 = vmatprep.subr.mxu0 0.0
    %333 = vmatpush1.xpose.msra.mxu0 0.0
    %334 = vmatprep.subr.mxu0 0.0
    %335 = vmatpush1.xpose.msra.mxu0 0.0
    %336 = vmatprep.subr.mxu0 0.0
    %337 = vmatpush1.xpose.msra.mxu0 0.0
    %338 = vmatprep.subr.mxu0 0.0
    %339 = vmatpush1.xpose.msra.mxu0 0.0
    %340 = vmatprep.subr.mxu0 0.0
    %341 = vmatpush1.xpose.msra.mxu0 0.0
    %342 = vmatprep.subr.mxu0 0.0
    %343 = vmatpush1.xpose.msra.mxu0 0.0
    %344 = vmatprep.subr.mxu0 0.0
    %345 = vmatpush1.xpose.msra.mxu0 0.0
    %346 = vmatprep.subr.mxu0 0.0
    %347 = vmatpush1.xpose.msra.mxu0 0.0
    %348 = vmatprep.subr.mxu0 0.0
    %349 = vmatpush1.xpose.msra.mxu0 0.0
    %350 = vmatprep.subr.mxu0 0.0
    %351 = vmatpush1.xpose.msra.mxu0 0.0
    %352 = vmatprep.subr.mxu0 0.0
    %353 = vmatpush1.xpose.msra.mxu0 0.0
    %354 = vmatprep.subr.mxu0 0.0
    %355 = vmatpush1.xpose.msra.mxu0 0.0
    %356 = vmatprep.subr.mxu0 0.0
    %357 = vmatpush1.xpose.msra.mxu0 0.0
    %358 = vmatprep.subr.mxu0 0.0
    %359 = vmatpush1.xpose.msra.mxu0 0.0
    %360 = vmatprep.subr.mxu0 0.0
    %361 = vmatpush1.xpose.msra.mxu0 0.0
    %362 = vmatprep.subr.mxu0 0.0
    %363 = vmatpush1.xpose.msra.mxu0 0.0
    %364 = vmatprep.subr.mxu0 0.0
    %365 = vmatpush1.xpose.msra.mxu0 0.0
    %366 = vmatprep.subr.mxu0 0.0
    %367 = vmatpush1.xpose.msra.mxu0 0.0
    %368 = vmatprep.subr.mxu0 0.0
    %369 = vmatpush1.xpose.msra.mxu0 0.0
    %370 = vmatprep.mubr.f32.mxu0 0.0
    %371 = vmatmul.mubr.f32.gmra.mrb[0].mxu0 %v302
    %v372 = vpop.f32.mrb[0].mxu0
    %v373 = vadd.f32 %v131, %v372
    %v374 = vpop.f32.mrb[0].mxu0
    %375 = vdwg.mxu0
    %v376 = vsel %vm135, %v373, -inf
    %377 = vmax.xlane.f32.xlu0 %v376
    %v378 = vpop.xlane.xlu0 %377
    %v379 = vsub.f32 %v373, %v378
    %v380 = vmul.f32 %v379, 1.442695
    %v381 = vpow.pop %v380
    %v382 = vsel %vm135, %v381, 0.0
    %383 = vadd.xlane.f32.xlu0 %v382
    %v384 = vpop.xlane.xlu0 %383
    %v385 = vrcp.pop %v384
    %v386 = vmul.f32 %v381, %v385
    %387 = vrot.lane.b32.xlu0 %v118, 56
    %v388 = vpop.permute.xlu0 %387
    %v391 = vsel %vm135, %v386, 0
    %393 = vmatprep.subr.mxu0 0.0
    %394 = vmatpush1.msra.mxu0 %v388
    %395 = vmatprep.subr.mxu0 0.0
    %396 = vmatpush1.msra.mxu0 0.0
    %397 = vmatprep.subr.mxu0 0.0
    %398 = vmatpush1.msra.mxu0 0.0
    %399 = vmatprep.subr.mxu0 0.0
    %400 = vmatpush1.msra.mxu0 0.0
    %401 = vmatprep.subr.mxu0 0.0
    %402 = vmatpush1.msra.mxu0 0.0
    %403 = vmatprep.subr.mxu0 0.0
    %404 = vmatpush1.msra.mxu0 0.0
    %405 = vmatprep.subr.mxu0 0.0
    %406 = vmatpush1.msra.mxu0 0.0
    %407 = vmatprep.subr.mxu0 0.0
    %408 = vmatpush1.msra.mxu0 0.0
    %409 = vmatprep.subr.mxu0 0.0
    %410 = vmatpush1.msra.mxu0 0.0
    %411 = vmatprep.subr.mxu0 0.0
    %412 = vmatpush1.msra.mxu0 0.0
    %413 = vmatprep.subr.mxu0 0.0
    %414 = vmatpush1.msra.mxu0 0.0
    %415 = vmatprep.subr.mxu0 0.0
    %416 = vmatpush1.msra.mxu0 0.0
    %417 = vmatprep.subr.mxu0 0.0
    %418 = vmatpush1.msra.mxu0 0.0
    %419 = vmatprep.subr.mxu0 0.0
    %420 = vmatpush1.msra.mxu0 0.0
    %421 = vmatprep.subr.mxu0 0.0
    %422 = vmatpush1.msra.mxu0 0.0
    %423 = vmatprep.subr.mxu0 0.0
    %424 = vmatpush1.msra.mxu0 0.0
    %425 = vmatprep.subr.mxu0 0.0
    %426 = vmatpush1.msra.mxu0 0.0
    %427 = vmatprep.subr.mxu0 0.0
    %428 = vmatpush1.msra.mxu0 0.0
    %429 = vmatprep.subr.mxu0 0.0
    %430 = vmatpush1.msra.mxu0 0.0
    %431 = vmatprep.subr.mxu0 0.0
    %432 = vmatpush1.msra.mxu0 0.0
    %433 = vmatprep.subr.mxu0 0.0
    %434 = vmatpush1.msra.mxu0 0.0
    %435 = vmatprep.subr.mxu0 0.0
    %436 = vmatpush1.msra.mxu0 0.0
    %437 = vmatprep.subr.mxu0 0.0
    %438 = vmatpush1.msra.mxu0 0.0
    %439 = vmatprep.subr.mxu0 0.0
    %440 = vmatpush1.msra.mxu0 0.0
    %441 = vmatprep.subr.mxu0 0.0
    %442 = vmatpush1.msra.mxu0 0.0
    %443 = vmatprep.subr.mxu0 0.0
    %444 = vmatpush1.msra.mxu0 0.0
    %445 = vmatprep.subr.mxu0 0.0
    %446 = vmatpush1.msra.mxu0 0.0
    %447 = vmatprep.subr.mxu0 0.0
    %448 = vmatpush1.msra.mxu0 0.0
    %449 = vmatprep.subr.mxu0 0.0
    %450 = vmatpush1.msra.mxu0 0.0
    %451 = vmatprep.subr.mxu0 0.0
    %452 = vmatpush1.msra.mxu0 0.0
    %453 = vmatprep.subr.mxu0 0.0
    %454 = vmatpush1.msra.mxu0 0.0
    %455 = vmatprep.subr.mxu0 0.0
    %456 = vmatpush1.msra.mxu0 0.0
    %457 = vmatprep.mubr.f32.mxu0 0.0
    %458 = vmatmul.mubr.f32.gmra.mrb[0].mxu0 %v391
    %v459 = vpop.f32.mrb[0].mxu0
    %v460 = vadd.f32 0.0, %v459
    %v461 = vpop.f32.mrb[0].mxu0
    %462 = vdwg.mxu0
    %464 = vrot.lane.b32.xlu0 %v460, 8
    %v465 = vpop.permute.xlu0 %464
    %vm467 = vcmask 130112
    %468 = vst.msk [vmem:[#allocation7] sm:$0xff] %vm467, %v465
    %469 = vrot.lane.b32.xlu0 %v118, 112
    %v470 = vpop.permute.xlu0 %469
    %471 = vrot.lane.b32.xlu0 %v118, 80
    %v472 = vpop.permute.xlu0 %471
    %v473 = vsel %vm135, %v470, 0
    %v475 = vsel %vm135, %v472, 0
    %477 = vmatprep.subr.mxu0 0.0
    %478 = vmatpush1.xpose.msra.mxu0 %v475
    %479 = vmatprep.subr.mxu0 0.0
    %480 = vmatpush1.xpose.msra.mxu0 0.0
    %481 = vmatprep.subr.mxu0 0.0
    %482 = vmatpush1.xpose.msra.mxu0 0.0
    %483 = vmatprep.subr.mxu0 0.0
    %484 = vmatpush1.xpose.msra.mxu0 0.0
    %485 = vmatprep.subr.mxu0 0.0
    %486 = vmatpush1.xpose.msra.mxu0 0.0
    %487 = vmatprep.subr.mxu0 0.0
    %488 = vmatpush1.xpose.msra.mxu0 0.0
    %489 = vmatprep.subr.mxu0 0.0
    %490 = vmatpush1.xpose.msra.mxu0 0.0
    %491 = vmatprep.subr.mxu0 0.0
    %492 = vmatpush1.xpose.msra.mxu0 0.0
    %493 = vmatprep.subr.mxu0 0.0
    %494 = vmatpush1.xpose.msra.mxu0 0.0
    %495 = vmatprep.subr.mxu0 0.0
    %496 = vmatpush1.xpose.msra.mxu0 0.0
    %497 = vmatprep.subr.mxu0 0.0
    %498 = vmatpush1.xpose.msra.mxu0 0.0
    %499 = vmatprep.subr.mxu0 0.0
    %500 = vmatpush1.xpose.msra.mxu0 0.0
    %501 = vmatprep.subr.mxu0 0.0
    %502 = vmatpush1.xpose.msra.mxu0 0.0
    %503 = vmatprep.subr.mxu0 0.0
    %504 = vmatpush1.xpose.msra.mxu0 0.0
    %505 = vmatprep.subr.mxu0 0.0
    %506 = vmatpush1.xpose.msra.mxu0 0.0
    %507 = vmatprep.subr.mxu0 0.0
    %508 = vmatpush1.xpose.msra.mxu0 0.0
    %509 = vmatprep.subr.mxu0 0.0
    %510 = vmatpush1.xpose.msra.mxu0 0.0
    %511 = vmatprep.subr.mxu0 0.0
    %512 = vmatpush1.xpose.msra.mxu0 0.0
    %513 = vmatprep.subr.mxu0 0.0
    %514 = vmatpush1.xpose.msra.mxu0 0.0
    %515 = vmatprep.subr.mxu0 0.0
    %516 = vmatpush1.xpose.msra.mxu0 0.0
    %517 = vmatprep.subr.mxu0 0.0
    %518 = vmatpush1.xpose.msra.mxu0 0.0
    %519 = vmatprep.subr.mxu0 0.0
    %520 = vmatpush1.xpose.msra.mxu0 0.0
    %521 = vmatprep.subr.mxu0 0.0
    %522 = vmatpush1.xpose.msra.mxu0 0.0
    %523 = vmatprep.subr.mxu0 0.0
    %524 = vmatpush1.xpose.msra.mxu0 0.0
    %525 = vmatprep.subr.mxu0 0.0
    %526 = vmatpush1.xpose.msra.mxu0 0.0
    %527 = vmatprep.subr.mxu0 0.0
    %528 = vmatpush1.xpose.msra.mxu0 0.0
    %529 = vmatprep.subr.mxu0 0.0
    %530 = vmatpush1.xpose.msra.mxu0 0.0
    %531 = vmatprep.subr.mxu0 0.0
    %532 = vmatpush1.xpose.msra.mxu0 0.0
    %533 = vmatprep.subr.mxu0 0.0
    %534 = vmatpush1.xpose.msra.mxu0 0.0
    %535 = vmatprep.subr.mxu0 0.0
    %536 = vmatpush1.xpose.msra.mxu0 0.0
    %537 = vmatprep.subr.mxu0 0.0
    %538 = vmatpush1.xpose.msra.mxu0 0.0
    %539 = vmatprep.subr.mxu0 0.0
    %540 = vmatpush1.xpose.msra.mxu0 0.0
    %541 = vmatprep.mubr.f32.mxu0 0.0
    %542 = vmatmul.mubr.f32.gmra.mrb[0].mxu0 %v473
    %v543 = vpop.f32.mrb[0].mxu0
    %v544 = vadd.f32 %v131, %v543
    %v545 = vpop.f32.mrb[0].mxu0
    %546 = vdwg.mxu0
    %v547 = vsel %vm135, %v544, -inf
    %548 = vmax.xlane.f32.xlu0 %v547
    %v549 = vpop.xlane.xlu0 %548
    %v550 = vsub.f32 %v544, %v549
    %v551 = vmul.f32 %v550, 1.442695
    %v552 = vpow.pop %v551
    %v553 = vsel %vm135, %v552, 0.0
    %554 = vadd.xlane.f32.xlu0 %v553
    %v555 = vpop.xlane.xlu0 %554
    %v556 = vrcp.pop %v555
    %v557 = vmul.f32 %v552, %v556
    %558 = vrot.lane.b32.xlu0 %v118, 48
    %v559 = vpop.permute.xlu0 %558
    %v562 = vsel %vm135, %v557, 0
    %564 = vmatprep.subr.mxu0 0.0
    %565 = vmatpush1.msra.mxu0 %v559
    %566 = vmatprep.subr.mxu0 0.0
    %567 = vmatpush1.msra.mxu0 0.0
    %568 = vmatprep.subr.mxu0 0.0
    %569 = vmatpush1.msra.mxu0 0.0
    %570 = vmatprep.subr.mxu0 0.0
    %571 = vmatpush1.msra.mxu0 0.0
    %572 = vmatprep.subr.mxu0 0.0
    %573 = vmatpush1.msra.mxu0 0.0
    %574 = vmatprep.subr.mxu0 0.0
    %575 = vmatpush1.msra.mxu0 0.0
    %576 = vmatprep.subr.mxu0 0.0
    %577 = vmatpush1.msra.mxu0 0.0
    %578 = vmatprep.subr.mxu0 0.0
    %579 = vmatpush1.msra.mxu0 0.0
    %580 = vmatprep.subr.mxu0 0.0
    %581 = vmatpush1.msra.mxu0 0.0
    %582 = vmatprep.subr.mxu0 0.0
    %583 = vmatpush1.msra.mxu0 0.0
    %584 = vmatprep.subr.mxu0 0.0
    %585 = vmatpush1.msra.mxu0 0.0
    %586 = vmatprep.subr.mxu0 0.0
    %587 = vmatpush1.msra.mxu0 0.0
    %588 = vmatprep.subr.mxu0 0.0
    %589 = vmatpush1.msra.mxu0 0.0
    %590 = vmatprep.subr.mxu0 0.0
    %591 = vmatpush1.msra.mxu0 0.0
    %592 = vmatprep.subr.mxu0 0.0
    %593 = vmatpush1.msra.mxu0 0.0
    %594 = vmatprep.subr.mxu0 0.0
    %595 = vmatpush1.msra.mxu0 0.0
    %596 = vmatprep.subr.mxu0 0.0
    %597 = vmatpush1.msra.mxu0 0.0
    %598 = vmatprep.subr.mxu0 0.0
    %599 = vmatpush1.msra.mxu0 0.0
    %600 = vmatprep.subr.mxu0 0.0
    %601 = vmatpush1.msra.mxu0 0.0
    %602 = vmatprep.subr.mxu0 0.0
    %603 = vmatpush1.msra.mxu0 0.0
    %604 = vmatprep.subr.mxu0 0.0
    %605 = vmatpush1.msra.mxu0 0.0
    %606 = vmatprep.subr.mxu0 0.0
    %607 = vmatpush1.msra.mxu0 0.0
    %608 = vmatprep.subr.mxu0 0.0
    %609 = vmatpush1.msra.mxu0 0.0
    %610 = vmatprep.subr.mxu0 0.0
    %611 = vmatpush1.msra.mxu0 0.0
    %612 = vmatprep.subr.mxu0 0.0
    %613 = vmatpush1.msra.mxu0 0.0
    %614 = vmatprep.subr.mxu0 0.0
    %615 = vmatpush1.msra.mxu0 0.0
    %616 = vmatprep.subr.mxu0 0.0
    %617 = vmatpush1.msra.mxu0 0.0
    %618 = vmatprep.subr.mxu0 0.0
    %619 = vmatpush1.msra.mxu0 0.0
    %620 = vmatprep.subr.mxu0 0.0
    %621 = vmatpush1.msra.mxu0 0.0
    %622 = vmatprep.subr.mxu0 0.0
    %623 = vmatpush1.msra.mxu0 0.0
    %624 = vmatprep.subr.mxu0 0.0
    %625 = vmatpush1.msra.mxu0 0.0
    %626 = vmatprep.subr.mxu0 0.0
    %627 = vmatpush1.msra.mxu0 0.0
    %628 = vmatprep.mubr.f32.mxu0 0.0
    %629 = vmatmul.mubr.f32.gmra.mrb[0].mxu0 %v562
    %v630 = vpop.f32.mrb[0].mxu0
    %v631 = vadd.f32 0.0, %v630
    %v632 = vpop.f32.mrb[0].mxu0
    %633 = vdwg.mxu0
    %635 = vrot.lane.b32.xlu0 %v631, 16
    %v636 = vpop.permute.xlu0 %635
    %vm638 = vcmask 195712
    %639 = vst.msk [vmem:[#allocation7] sm:$0xff] %vm638, %v636
    %640 = vrot.lane.b32.xlu0 %v118, 104
    %v641 = vpop.permute.xlu0 %640
    %642 = vrot.lane.b32.xlu0 %v118, 72
    %v643 = vpop.permute.xlu0 %642
    %v644 = vsel %vm135, %v641, 0
    %v646 = vsel %vm135, %v643, 0
    %648 = vmatprep.subr.mxu0 0.0
    %649 = vmatpush1.xpose.msra.mxu0 %v646
    %650 = vmatprep.subr.mxu0 0.0
    %651 = vmatpush1.xpose.msra.mxu0 0.0
    %652 = vmatprep.subr.mxu0 0.0
    %653 = vmatpush1.xpose.msra.mxu0 0.0
    %654 = vmatprep.subr.mxu0 0.0
    %655 = vmatpush1.xpose.msra.mxu0 0.0
    %656 = vmatprep.subr.mxu0 0.0
    %657 = vmatpush1.xpose.msra.mxu0 0.0
    %658 = vmatprep.subr.mxu0 0.0
    %659 = vmatpush1.xpose.msra.mxu0 0.0
    %660 = vmatprep.subr.mxu0 0.0
    %661 = vmatpush1.xpose.msra.mxu0 0.0
    %662 = vmatprep.subr.mxu0 0.0
    %663 = vmatpush1.xpose.msra.mxu0 0.0
    %664 = vmatprep.subr.mxu0 0.0
    %665 = vmatpush1.xpose.msra.mxu0 0.0
    %666 = vmatprep.subr.mxu0 0.0
    %667 = vmatpush1.xpose.msra.mxu0 0.0
    %668 = vmatprep.subr.mxu0 0.0
    %669 = vmatpush1.xpose.msra.mxu0 0.0
    %670 = vmatprep.subr.mxu0 0.0
    %671 = vmatpush1.xpose.msra.mxu0 0.0
    %672 = vmatprep.subr.mxu0 0.0
    %673 = vmatpush1.xpose.msra.mxu0 0.0
    %674 = vmatprep.subr.mxu0 0.0
    %675 = vmatpush1.xpose.msra.mxu0 0.0
    %676 = vmatprep.subr.mxu0 0.0
    %677 = vmatpush1.xpose.msra.mxu0 0.0
    %678 = vmatprep.subr.mxu0 0.0
    %679 = vmatpush1.xpose.msra.mxu0 0.0
    %680 = vmatprep.subr.mxu0 0.0
    %681 = vmatpush1.xpose.msra.mxu0 0.0
    %682 = vmatprep.subr.mxu0 0.0
    %683 = vmatpush1.xpose.msra.mxu0 0.0
    %684 = vmatprep.subr.mxu0 0.0
    %685 = vmatpush1.xpose.msra.mxu0 0.0
    %686 = vmatprep.subr.mxu0 0.0
    %687 = vmatpush1.xpose.msra.mxu0 0.0
    %688 = vmatprep.subr.mxu0 0.0
    %689 = vmatpush1.xpose.msra.mxu0 0.0
    %690 = vmatprep.subr.mxu0 0.0
    %691 = vmatpush1.xpose.msra.mxu0 0.0
    %692 = vmatprep.subr.mxu0 0.0
    %693 = vmatpush1.xpose.msra.mxu0 0.0
    %694 = vmatprep.subr.mxu0 0.0
    %695 = vmatpush1.xpose.msra.mxu0 0.0
    %696 = vmatprep.subr.mxu0 0.0
    %697 = vmatpush1.xpose.msra.mxu0 0.0
    %698 = vmatprep.subr.mxu0 0.0
    %699 = vmatpush1.xpose.msra.mxu0 0.0
    %700 = vmatprep.subr.mxu0 0.0
    %701 = vmatpush1.xpose.msra.mxu0 0.0
    %702 = vmatprep.subr.mxu0 0.0
    %703 = vmatpush1.xpose.msra.mxu0 0.0
    %704 = vmatprep.subr.mxu0 0.0
    %705 = vmatpush1.xpose.msra.mxu0 0.0
    %706 = vmatprep.subr.mxu0 0.0
    %707 = vmatpush1.xpose.msra.mxu0 0.0
    %708 = vmatprep.subr.mxu0 0.0
    %709 = vmatpush1.xpose.msra.mxu0 0.0
    %710 = vmatprep.subr.mxu0 0.0
    %711 = vmatpush1.xpose.msra.mxu0 0.0
    %712 = vmatprep.mubr.f32.mxu0 0.0
    %713 = vmatmul.mubr.f32.gmra.mrb[0].mxu0 %v644
    %v714 = vpop.f32.mrb[0].mxu0
    %v715 = vadd.f32 %v131, %v714
    %v716 = vpop.f32.mrb[0].mxu0
    %717 = vdwg.mxu0
    %v718 = vsel %vm135, %v715, -inf
    %719 = vmax.xlane.f32.xlu0 %v718
    %v720 = vpop.xlane.xlu0 %719
    %v721 = vsub.f32 %v715, %v720
    %v722 = vmul.f32 %v721, 1.442695
    %v723 = vpow.pop %v722
    %v724 = vsel %vm135, %v723, 0.0
    %725 = vadd.xlane.f32.xlu0 %v724
    %v726 = vpop.xlane.xlu0 %725
    %v727 = vrcp.pop %v726
    %v728 = vmul.f32 %v723, %v727
    %729 = vrot.lane.b32.xlu0 %v118, 40
    %v730 = vpop.permute.xlu0 %729
    %v733 = vsel %vm135, %v728, 0
    %735 = vmatprep.subr.mxu0 0.0
    %736 = vmatpush1.msra.mxu0 %v730
    %737 = vmatprep.subr.mxu0 0.0
    %738 = vmatpush1.msra.mxu0 0.0
    %739 = vmatprep.subr.mxu0 0.0
    %740 = vmatpush1.msra.mxu0 0.0
    %741 = vmatprep.subr.mxu0 0.0
    %742 = vmatpush1.msra.mxu0 0.0
    %743 = vmatprep.subr.mxu0 0.0
    %744 = vmatpush1.msra.mxu0 0.0
    %745 = vmatprep.subr.mxu0 0.0
    %746 = vmatpush1.msra.mxu0 0.0
    %747 = vmatprep.subr.mxu0 0.0
    %748 = vmatpush1.msra.mxu0 0.0
    %749 = vmatprep.subr.mxu0 0.0
    %750 = vmatpush1.msra.mxu0 0.0
    %751 = vmatprep.subr.mxu0 0.0
    %752 = vmatpush1.msra.mxu0 0.0
    %753 = vmatprep.subr.mxu0 0.0
    %754 = vmatpush1.msra.mxu0 0.0
    %755 = vmatprep.subr.mxu0 0.0
    %756 = vmatpush1.msra.mxu0 0.0
    %757 = vmatprep.subr.mxu0 0.0
    %758 = vmatpush1.msra.mxu0 0.0
    %759 = vmatprep.subr.mxu0 0.0
    %760 = vmatpush1.msra.mxu0 0.0
    %761 = vmatprep.subr.mxu0 0.0
    %762 = vmatpush1.msra.mxu0 0.0
    %763 = vmatprep.subr.mxu0 0.0
    %764 = vmatpush1.msra.mxu0 0.0
    %765 = vmatprep.subr.mxu0 0.0
    %766 = vmatpush1.msra.mxu0 0.0
    %767 = vmatprep.subr.mxu0 0.0
    %768 = vmatpush1.msra.mxu0 0.0
    %769 = vmatprep.subr.mxu0 0.0
    %770 = vmatpush1.msra.mxu0 0.0
    %771 = vmatprep.subr.mxu0 0.0
    %772 = vmatpush1.msra.mxu0 0.0
    %773 = vmatprep.subr.mxu0 0.0
    %774 = vmatpush1.msra.mxu0 0.0
    %775 = vmatprep.subr.mxu0 0.0
    %776 = vmatpush1.msra.mxu0 0.0
    %777 = vmatprep.subr.mxu0 0.0
    %778 = vmatpush1.msra.mxu0 0.0
    %779 = vmatprep.subr.mxu0 0.0
    %780 = vmatpush1.msra.mxu0 0.0
    %781 = vmatprep.subr.mxu0 0.0
    %782 = vmatpush1.msra.mxu0 0.0
    %783 = vmatprep.subr.mxu0 0.0
    %784 = vmatpush1.msra.mxu0 0.0
    %785 = vmatprep.subr.mxu0 0.0
    %786 = vmatpush1.msra.mxu0 0.0
    %787 = vmatprep.subr.mxu0 0.0
    %788 = vmatpush1.msra.mxu0 0.0
    %789 = vmatprep.subr.mxu0 0.0
    %790 = vmatpush1.msra.mxu0 0.0
    %791 = vmatprep.subr.mxu0 0.0
    %792 = vmatpush1.msra.mxu0 0.0
    %793 = vmatprep.subr.mxu0 0.0
    %794 = vmatpush1.msra.mxu0 0.0
    %795 = vmatprep.subr.mxu0 0.0
    %796 = vmatpush1.msra.mxu0 0.0
    %797 = vmatprep.subr.mxu0 0.0
    %798 = vmatpush1.msra.mxu0 0.0
    %799 = vmatprep.mubr.f32.mxu0 0.0
    %800 = vmatmul.mubr.f32.gmra.mrb[0].mxu0 %v733
    %v801 = vpop.f32.mrb[0].mxu0
    %v802 = vadd.f32 0.0, %v801
    %v803 = vpop.f32.mrb[0].mxu0
    %804 = vdwg.mxu0
    %806 = vrot.lane.b32.xlu0 %v802, 24
    %v807 = vpop.permute.xlu0 %806
    %vm809 = vcmask 261312
    %810 = vst.msk [vmem:[#allocation7] sm:$0xff] %vm809, %v807
    %812 = vrot.lane.b32.xlu0 %v123, 96
    %v813 = vpop.permute.xlu0 %812
    %v814 = vsel %vm135, %v123, 0
    %v816 = vsel %vm135, %v813, 0
    %818 = vmatprep.subr.mxu0 0.0
    %819 = vmatpush1.xpose.msra.mxu0 %v816
    %820 = vmatprep.subr.mxu0 0.0
    %821 = vmatpush1.xpose.msra.mxu0 0.0
    %822 = vmatprep.subr.mxu0 0.0
    %823 = vmatpush1.xpose.msra.mxu0 0.0
    %824 = vmatprep.subr.mxu0 0.0
    %825 = vmatpush1.xpose.msra.mxu0 0.0
    %826 = vmatprep.subr.mxu0 0.0
    %827 = vmatpush1.xpose.msra.mxu0 0.0
    %828 = vmatprep.subr.mxu0 0.0
    %829 = vmatpush1.xpose.msra.mxu0 0.0
    %830 = vmatprep.subr.mxu0 0.0
    %831 = vmatpush1.xpose.msra.mxu0 0.0
    %832 = vmatprep.subr.mxu0 0.0
    %833 = vmatpush1.xpose.msra.mxu0 0.0
    %834 = vmatprep.subr.mxu0 0.0
    %835 = vmatpush1.xpose.msra.mxu0 0.0
    %836 = vmatprep.subr.mxu0 0.0
    %837 = vmatpush1.xpose.msra.mxu0 0.0
    %838 = vmatprep.subr.mxu0 0.0
    %839 = vmatpush1.xpose.msra.mxu0 0.0
    %840 = vmatprep.subr.mxu0 0.0
    %841 = vmatpush1.xpose.msra.mxu0 0.0
    %842 = vmatprep.subr.mxu0 0.0
    %843 = vmatpush1.xpose.msra.mxu0 0.0
    %844 = vmatprep.subr.mxu0 0.0
    %845 = vmatpush1.xpose.msra.mxu0 0.0
    %846 = vmatprep.subr.mxu0 0.0
    %847 = vmatpush1.xpose.msra.mxu0 0.0
    %848 = vmatprep.subr.mxu0 0.0
    %849 = vmatpush1.xpose.msra.mxu0 0.0
    %850 = vmatprep.subr.mxu0 0.0
    %851 = vmatpush1.xpose.msra.mxu0 0.0
    %852 = vmatprep.subr.mxu0 0.0
    %853 = vmatpush1.xpose.msra.mxu0 0.0
    %854 = vmatprep.subr.mxu0 0.0
    %855 = vmatpush1.xpose.msra.mxu0 0.0
    %856 = vmatprep.subr.mxu0 0.0
    %857 = vmatpush1.xpose.msra.mxu0 0.0
    %858 = vmatprep.subr.mxu0 0.0
    %859 = vmatpush1.xpose.msra.mxu0 0.0
    %860 = vmatprep.subr.mxu0 0.0
    %861 = vmatpush1.xpose.msra.mxu0 0.0
    %862 = vmatprep.subr.mxu0 0.0
    %863 = vmatpush1.xpose.msra.mxu0 0.0
    %864 = vmatprep.subr.mxu0 0.0
    %865 = vmatpush1.xpose.msra.mxu0 0.0
    %866 = vmatprep.subr.mxu0 0.0
    %867 = vmatpush1.xpose.msra.mxu0 0.0
    %868 = vmatprep.subr.mxu0 0.0
    %869 = vmatpush1.xpose.msra.mxu0 0.0
    %870 = vmatprep.subr.mxu0 0.0
    %871 = vmatpush1.xpose.msra.mxu0 0.0
    %872 = vmatprep.subr.mxu0 0.0
    %873 = vmatpush1.xpose.msra.mxu0 0.0
    %874 = vmatprep.subr.mxu0 0.0
    %875 = vmatpush1.xpose.msra.mxu0 0.0
    %876 = vmatprep.subr.mxu0 0.0
    %877 = vmatpush1.xpose.msra.mxu0 0.0
    %878 = vmatprep.subr.mxu0 0.0
    %879 = vmatpush1.xpose.msra.mxu0 0.0
    %880 = vmatprep.subr.mxu0 0.0
    %881 = vmatpush1.xpose.msra.mxu0 0.0
    %882 = vmatprep.mubr.f32.mxu0 0.0
    %883 = vmatmul.mubr.f32.gmra.mrb[0].mxu0 %v814
    %v884 = vpop.f32.mrb[0].mxu0
    %v885 = vadd.f32 %v131, %v884
    %v886 = vpop.f32.mrb[0].mxu0
    %887 = vdwg.mxu0
    %v888 = vsel %vm135, %v885, -inf
    %889 = vmax.xlane.f32.xlu0 %v888
    %v890 = vpop.xlane.xlu0 %889
    %v891 = vsub.f32 %v885, %v890
    %v892 = vmul.f32 %v891, 1.442695
    %v893 = vpow.pop %v892
    %v894 = vsel %vm135, %v893, 0.0
    %895 = vadd.xlane.f32.xlu0 %v894
    %v896 = vpop.xlane.xlu0 %895
    %v897 = vrcp.pop %v896
    %v898 = vmul.f32 %v893, %v897
    %899 = vrot.lane.b32.xlu0 %v123, 64
    %v900 = vpop.permute.xlu0 %899
    %v903 = vsel %vm135, %v898, 0
    %905 = vmatprep.subr.mxu0 0.0
    %906 = vmatpush1.msra.mxu0 %v900
    %907 = vmatprep.subr.mxu0 0.0
    %908 = vmatpush1.msra.mxu0 0.0
    %909 = vmatprep.subr.mxu0 0.0
    %910 = vmatpush1.msra.mxu0 0.0
    %911 = vmatprep.subr.mxu0 0.0
    %912 = vmatpush1.msra.mxu0 0.0
    %913 = vmatprep.subr.mxu0 0.0
    %914 = vmatpush1.msra.mxu0 0.0
    %915 = vmatprep.subr.mxu0 0.0
    %916 = vmatpush1.msra.mxu0 0.0
    %917 = vmatprep.subr.mxu0 0.0
    %918 = vmatpush1.msra.mxu0 0.0
    %919 = vmatprep.subr.mxu0 0.0
    %920 = vmatpush1.msra.mxu0 0.0
    %921 = vmatprep.subr.mxu0 0.0
    %922 = vmatpush1.msra.mxu0 0.0
    %923 = vmatprep.subr.mxu0 0.0
    %924 = vmatpush1.msra.mxu0 0.0
    %925 = vmatprep.subr.mxu0 0.0
    %926 = vmatpush1.msra.mxu0 0.0
    %927 = vmatprep.subr.mxu0 0.0
    %928 = vmatpush1.msra.mxu0 0.0
    %929 = vmatprep.subr.mxu0 0.0
    %930 = vmatpush1.msra.mxu0 0.0
    %931 = vmatprep.subr.mxu0 0.0
    %932 = vmatpush1.msra.mxu0 0.0
    %933 = vmatprep.subr.mxu0 0.0
    %934 = vmatpush1.msra.mxu0 0.0
    %935 = vmatprep.subr.mxu0 0.0
    %936 = vmatpush1.msra.mxu0 0.0
    %937 = vmatprep.subr.mxu0 0.0
    %938 = vmatpush1.msra.mxu0 0.0
    %939 = vmatprep.subr.mxu0 0.0
    %940 = vmatpush1.msra.mxu0 0.0
    %941 = vmatprep.subr.mxu0 0.0
    %942 = vmatpush1.msra.mxu0 0.0
    %943 = vmatprep.subr.mxu0 0.0
    %944 = vmatpush1.msra.mxu0 0.0
    %945 = vmatprep.subr.mxu0 0.0
    %946 = vmatpush1.msra.mxu0 0.0
    %947 = vmatprep.subr.mxu0 0.0
    %948 = vmatpush1.msra.mxu0 0.0
    %949 = vmatprep.subr.mxu0 0.0
    %950 = vmatpush1.msra.mxu0 0.0
    %951 = vmatprep.subr.mxu0 0.0
    %952 = vmatpush1.msra.mxu0 0.0
    %953 = vmatprep.subr.mxu0 0.0
    %954 = vmatpush1.msra.mxu0 0.0
    %955 = vmatprep.subr.mxu0 0.0
    %956 = vmatpush1.msra.mxu0 0.0
    %957 = vmatprep.subr.mxu0 0.0
    %958 = vmatpush1.msra.mxu0 0.0
    %959 = vmatprep.subr.mxu0 0.0
    %960 = vmatpush1.msra.mxu0 0.0
    %961 = vmatprep.subr.mxu0 0.0
    %962 = vmatpush1.msra.mxu0 0.0
    %963 = vmatprep.subr.mxu0 0.0
    %964 = vmatpush1.msra.mxu0 0.0
    %965 = vmatprep.subr.mxu0 0.0
    %966 = vmatpush1.msra.mxu0 0.0
    %967 = vmatprep.subr.mxu0 0.0
    %968 = vmatpush1.msra.mxu0 0.0
    %969 = vmatprep.mubr.f32.mxu0 0.0
    %970 = vmatmul.mubr.f32.gmra.mrb[0].mxu0 %v903
    %v971 = vpop.f32.mrb[0].mxu0
    %v972 = vadd.f32 0.0, %v971
    %v973 = vpop.f32.mrb[0].mxu0
    %974 = vdwg.mxu0
    %s975 = scalar_lea.vmem [#allocation7], 8
    %976 = vst.msk [vmem:[%s975] sm:$0xff] %vm135, %v972
    %977 = vrot.lane.b32.xlu0 %v123, 120
    %v978 = vpop.permute.xlu0 %977
    %979 = vrot.lane.b32.xlu0 %v123, 88
    %v980 = vpop.permute.xlu0 %979
    %v981 = vsel %vm135, %v978, 0
    %v983 = vsel %vm135, %v980, 0
    %985 = vmatprep.subr.mxu0 0.0
    %986 = vmatpush1.xpose.msra.mxu0 %v983
    %987 = vmatprep.subr.mxu0 0.0
    %988 = vmatpush1.xpose.msra.mxu0 0.0
    %989 = vmatprep.subr.mxu0 0.0
    %990 = vmatpush1.xpose.msra.mxu0 0.0
    %991 = vmatprep.subr.mxu0 0.0
    %992 = vmatpush1.xpose.msra.mxu0 0.0
    %993 = vmatprep.subr.mxu0 0.0
    %994 = vmatpush1.xpose.msra.mxu0 0.0
    %995 = vmatprep.subr.mxu0 0.0
    %996 = vmatpush1.xpose.msra.mxu0 0.0
    %997 = vmatprep.subr.mxu0 0.0
    %998 = vmatpush1.xpose.msra.mxu0 0.0
    %999 = vmatprep.subr.mxu0 0.0
    %1000 = vmatpush1.xpose.msra.mxu0 0.0
    %1001 = vmatprep.subr.mxu0 0.0
    %1002 = vmatpush1.xpose.msra.mxu0 0.0
    %1003 = vmatprep.subr.mxu0 0.0
    %1004 = vmatpush1.xpose.msra.mxu0 0.0
    %1005 = vmatprep.subr.mxu0 0.0
    %1006 = vmatpush1.xpose.msra.mxu0 0.0
    %1007 = vmatprep.subr.mxu0 0.0
    %1008 = vmatpush1.xpose.msra.mxu0 0.0
    %1009 = vmatprep.subr.mxu0 0.0
    %1010 = vmatpush1.xpose.msra.mxu0 0.0
    %1011 = vmatprep.subr.mxu0 0.0
    %1012 = vmatpush1.xpose.msra.mxu0 0.0
    %1013 = vmatprep.subr.mxu0 0.0
    %1014 = vmatpush1.xpose.msra.mxu0 0.0
    %1015 = vmatprep.subr.mxu0 0.0
    %1016 = vmatpush1.xpose.msra.mxu0 0.0
    %1017 = vmatprep.subr.mxu0 0.0
    %1018 = vmatpush1.xpose.msra.mxu0 0.0
    %1019 = vmatprep.subr.mxu0 0.0
    %1020 = vmatpush1.xpose.msra.mxu0 0.0
    %1021 = vmatprep.subr.mxu0 0.0
    %1022 = vmatpush1.xpose.msra.mxu0 0.0
    %1023 = vmatprep.subr.mxu0 0.0
    %1024 = vmatpush1.xpose.msra.mxu0 0.0
    %1025 = vmatprep.subr.mxu0 0.0
    %1026 = vmatpush1.xpose.msra.mxu0 0.0
    %1027 = vmatprep.subr.mxu0 0.0
    %1028 = vmatpush1.xpose.msra.mxu0 0.0
    %1029 = vmatprep.subr.mxu0 0.0
    %1030 = vmatpush1.xpose.msra.mxu0 0.0
    %1031 = vmatprep.subr.mxu0 0.0
    %1032 = vmatpush1.xpose.msra.mxu0 0.0
    %1033 = vmatprep.subr.mxu0 0.0
    %1034 = vmatpush1.xpose.msra.mxu0 0.0
    %1035 = vmatprep.subr.mxu0 0.0
    %1036 = vmatpush1.xpose.msra.mxu0 0.0
    %1037 = vmatprep.subr.mxu0 0.0
    %1038 = vmatpush1.xpose.msra.mxu0 0.0
    %1039 = vmatprep.subr.mxu0 0.0
    %1040 = vmatpush1.xpose.msra.mxu0 0.0
    %1041 = vmatprep.subr.mxu0 0.0
    %1042 = vmatpush1.xpose.msra.mxu0 0.0
    %1043 = vmatprep.subr.mxu0 0.0
    %1044 = vmatpush1.xpose.msra.mxu0 0.0
    %1045 = vmatprep.subr.mxu0 0.0
    %1046 = vmatpush1.xpose.msra.mxu0 0.0
    %1047 = vmatprep.subr.mxu0 0.0
    %1048 = vmatpush1.xpose.msra.mxu0 0.0
    %1049 = vmatprep.mubr.f32.mxu0 0.0
    %1050 = vmatmul.mubr.f32.gmra.mrb[0].mxu0 %v981
    %v1051 = vpop.f32.mrb[0].mxu0
    %v1052 = vadd.f32 %v131, %v1051
    %v1053 = vpop.f32.mrb[0].mxu0
    %1054 = vdwg.mxu0
    %v1055 = vsel %vm135, %v1052, -inf
    %1056 = vmax.xlane.f32.xlu0 %v1055
    %v1057 = vpop.xlane.xlu0 %1056
    %v1058 = vsub.f32 %v1052, %v1057
    %v1059 = vmul.f32 %v1058, 1.442695
    %v1060 = vpow.pop %v1059
    %v1061 = vsel %vm135, %v1060, 0.0
    %1062 = vadd.xlane.f32.xlu0 %v1061
    %v1063 = vpop.xlane.xlu0 %1062
    %v1064 = vrcp.pop %v1063
    %v1065 = vmul.f32 %v1060, %v1064
    %1066 = vrot.lane.b32.xlu0 %v123, 56
    %v1067 = vpop.permute.xlu0 %1066
    %v1070 = vsel %vm135, %v1065, 0
    %1072 = vmatprep.subr.mxu0 0.0
    %1073 = vmatpush1.msra.mxu0 %v1067
    %1074 = vmatprep.subr.mxu0 0.0
    %1075 = vmatpush1.msra.mxu0 0.0
    %1076 = vmatprep.subr.mxu0 0.0
    %1077 = vmatpush1.msra.mxu0 0.0
    %1078 = vmatprep.subr.mxu0 0.0
    %1079 = vmatpush1.msra.mxu0 0.0
    %1080 = vmatprep.subr.mxu0 0.0
    %1081 = vmatpush1.msra.mxu0 0.0
    %1082 = vmatprep.subr.mxu0 0.0
    %1083 = vmatpush1.msra.mxu0 0.0
    %1084 = vmatprep.subr.mxu0 0.0
    %1085 = vmatpush1.msra.mxu0 0.0
    %1086 = vmatprep.subr.mxu0 0.0
    %1087 = vmatpush1.msra.mxu0 0.0
    %1088 = vmatprep.subr.mxu0 0.0
    %1089 = vmatpush1.msra.mxu0 0.0
    %1090 = vmatprep.subr.mxu0 0.0
    %1091 = vmatpush1.msra.mxu0 0.0
    %1092 = vmatprep.subr.mxu0 0.0
    %1093 = vmatpush1.msra.mxu0 0.0
    %1094 = vmatprep.subr.mxu0 0.0
    %1095 = vmatpush1.msra.mxu0 0.0
    %1096 = vmatprep.subr.mxu0 0.0
    %1097 = vmatpush1.msra.mxu0 0.0
    %1098 = vmatprep.subr.mxu0 0.0
    %1099 = vmatpush1.msra.mxu0 0.0
    %1100 = vmatprep.subr.mxu0 0.0
    %1101 = vmatpush1.msra.mxu0 0.0
    %1102 = vmatprep.subr.mxu0 0.0
    %1103 = vmatpush1.msra.mxu0 0.0
    %1104 = vmatprep.subr.mxu0 0.0
    %1105 = vmatpush1.msra.mxu0 0.0
    %1106 = vmatprep.subr.mxu0 0.0
    %1107 = vmatpush1.msra.mxu0 0.0
    %1108 = vmatprep.subr.mxu0 0.0
    %1109 = vmatpush1.msra.mxu0 0.0
    %1110 = vmatprep.subr.mxu0 0.0
    %1111 = vmatpush1.msra.mxu0 0.0
    %1112 = vmatprep.subr.mxu0 0.0
    %1113 = vmatpush1.msra.mxu0 0.0
    %1114 = vmatprep.subr.mxu0 0.0
    %1115 = vmatpush1.msra.mxu0 0.0
    %1116 = vmatprep.subr.mxu0 0.0
    %1117 = vmatpush1.msra.mxu0 0.0
    %1118 = vmatprep.subr.mxu0 0.0
    %1119 = vmatpush1.msra.mxu0 0.0
    %1120 = vmatprep.subr.mxu0 0.0
    %1121 = vmatpush1.msra.mxu0 0.0
    %1122 = vmatprep.subr.mxu0 0.0
    %1123 = vmatpush1.msra.mxu0 0.0
    %1124 = vmatprep.subr.mxu0 0.0
    %1125 = vmatpush1.msra.mxu0 0.0
    %1126 = vmatprep.subr.mxu0 0.0
    %1127 = vmatpush1.msra.mxu0 0.0
    %1128 = vmatprep.subr.mxu0 0.0
    %1129 = vmatpush1.msra.mxu0 0.0
    %1130 = vmatprep.subr.mxu0 0.0
    %1131 = vmatpush1.msra.mxu0 0.0
    %1132 = vmatprep.subr.mxu0 0.0
    %1133 = vmatpush1.msra.mxu0 0.0
    %1134 = vmatprep.subr.mxu0 0.0
    %1135 = vmatpush1.msra.mxu0 0.0
    %1136 = vmatprep.mubr.f32.mxu0 0.0
    %1137 = vmatmul.mubr.f32.gmra.mrb[0].mxu0 %v1070
    %v1138 = vpop.f32.mrb[0].mxu0
    %v1139 = vadd.f32 0.0, %v1138
    %v1140 = vpop.f32.mrb[0].mxu0
    %1141 = vdwg.mxu0
    %1143 = vrot.lane.b32.xlu0 %v1139, 8
    %v1144 = vpop.permute.xlu0 %1143
    %1146 = vst.msk [vmem:[%s975] sm:$0xff] %vm467, %v1144
    %1147 = vrot.lane.b32.xlu0 %v123, 112
    %v1148 = vpop.permute.xlu0 %1147
    %1149 = vrot.lane.b32.xlu0 %v123, 80
    %v1150 = vpop.permute.xlu0 %1149
    %v1151 = vsel %vm135, %v1148, 0
    %v1153 = vsel %vm135, %v1150, 0
    %1155 = vmatprep.subr.mxu0 0.0
    %1156 = vmatpush1.xpose.msra.mxu0 %v1153
    %1157 = vmatprep.subr.mxu0 0.0
    %1158 = vmatpush1.xpose.msra.mxu0 0.0
    %1159 = vmatprep.subr.mxu0 0.0
    %1160 = vmatpush1.xpose.msra.mxu0 0.0
    %1161 = vmatprep.subr.mxu0 0.0
    %1162 = vmatpush1.xpose.msra.mxu0 0.0
    %1163 = vmatprep.subr.mxu0 0.0
    %1164 = vmatpush1.xpose.msra.mxu0 0.0
    %1165 = vmatprep.subr.mxu0 0.0
    %1166 = vmatpush1.xpose.msra.mxu0 0.0
    %1167 = vmatprep.subr.mxu0 0.0
    %1168 = vmatpush1.xpose.msra.mxu0 0.0
    %1169 = vmatprep.subr.mxu0 0.0
    %1170 = vmatpush1.xpose.msra.mxu0 0.0
    %1171 = vmatprep.subr.mxu0 0.0
    %1172 = vmatpush1.xpose.msra.mxu0 0.0
    %1173 = vmatprep.subr.mxu0 0.0
    %1174 = vmatpush1.xpose.msra.mxu0 0.0
    %1175 = vmatprep.subr.mxu0 0.0
    %1176 = vmatpush1.xpose.msra.mxu0 0.0
    %1177 = vmatprep.subr.mxu0 0.0
    %1178 = vmatpush1.xpose.msra.mxu0 0.0
    %1179 = vmatprep.subr.mxu0 0.0
    %1180 = vmatpush1.xpose.msra.mxu0 0.0
    %1181 = vmatprep.subr.mxu0 0.0
    %1182 = vmatpush1.xpose.msra.mxu0 0.0
    %1183 = vmatprep.subr.mxu0 0.0
    %1184 = vmatpush1.xpose.msra.mxu0 0.0
    %1185 = vmatprep.subr.mxu0 0.0
    %1186 = vmatpush1.xpose.msra.mxu0 0.0
    %1187 = vmatprep.subr.mxu0 0.0
    %1188 = vmatpush1.xpose.msra.mxu0 0.0
    %1189 = vmatprep.subr.mxu0 0.0
    %1190 = vmatpush1.xpose.msra.mxu0 0.0
    %1191 = vmatprep.subr.mxu0 0.0
    %1192 = vmatpush1.xpose.msra.mxu0 0.0
    %1193 = vmatprep.subr.mxu0 0.0
    %1194 = vmatpush1.xpose.msra.mxu0 0.0
    %1195 = vmatprep.subr.mxu0 0.0
    %1196 = vmatpush1.xpose.msra.mxu0 0.0
    %1197 = vmatprep.subr.mxu0 0.0
    %1198 = vmatpush1.xpose.msra.mxu0 0.0
    %1199 = vmatprep.subr.mxu0 0.0
    %1200 = vmatpush1.xpose.msra.mxu0 0.0
    %1201 = vmatprep.subr.mxu0 0.0
    %1202 = vmatpush1.xpose.msra.mxu0 0.0
    %1203 = vmatprep.subr.mxu0 0.0
    %1204 = vmatpush1.xpose.msra.mxu0 0.0
    %1205 = vmatprep.subr.mxu0 0.0
    %1206 = vmatpush1.xpose.msra.mxu0 0.0
    %1207 = vmatprep.subr.mxu0 0.0
    %1208 = vmatpush1.xpose.msra.mxu0 0.0
    %1209 = vmatprep.subr.mxu0 0.0
    %1210 = vmatpush1.xpose.msra.mxu0 0.0
    %1211 = vmatprep.subr.mxu0 0.0
    %1212 = vmatpush1.xpose.msra.mxu0 0.0
    %1213 = vmatprep.subr.mxu0 0.0
    %1214 = vmatpush1.xpose.msra.mxu0 0.0
    %1215 = vmatprep.subr.mxu0 0.0
    %1216 = vmatpush1.xpose.msra.mxu0 0.0
    %1217 = vmatprep.subr.mxu0 0.0
    %1218 = vmatpush1.xpose.msra.mxu0 0.0
    %1219 = vmatprep.mubr.f32.mxu0 0.0
    %1220 = vmatmul.mubr.f32.gmra.mrb[0].mxu0 %v1151
    %v1221 = vpop.f32.mrb[0].mxu0
    %v1222 = vadd.f32 %v131, %v1221
    %v1223 = vpop.f32.mrb[0].mxu0
    %1224 = vdwg.mxu0
    %v1225 = vsel %vm135, %v1222, -inf
    %1226 = vmax.xlane.f32.xlu0 %v1225
    %v1227 = vpop.xlane.xlu0 %1226
    %v1228 = vsub.f32 %v1222, %v1227
    %v1229 = vmul.f32 %v1228, 1.442695
    %v1230 = vpow.pop %v1229
    %v1231 = vsel %vm135, %v1230, 0.0
    %1232 = vadd.xlane.f32.xlu0 %v1231
    %v1233 = vpop.xlane.xlu0 %1232
    %v1234 = vrcp.pop %v1233
    %v1235 = vmul.f32 %v1230, %v1234
    %1236 = vrot.lane.b32.xlu0 %v123, 48
    %v1237 = vpop.permute.xlu0 %1236
    %v1240 = vsel %vm135, %v1235, 0
    %1242 = vmatprep.subr.mxu0 0.0
    %1243 = vmatpush1.msra.mxu0 %v1237
    %1244 = vmatprep.subr.mxu0 0.0
    %1245 = vmatpush1.msra.mxu0 0.0
    %1246 = vmatprep.subr.mxu0 0.0
    %1247 = vmatpush1.msra.mxu0 0.0
    %1248 = vmatprep.subr.mxu0 0.0
    %1249 = vmatpush1.msra.mxu0 0.0
    %1250 = vmatprep.subr.mxu0 0.0
    %1251 = vmatpush1.msra.mxu0 0.0
    %1252 = vmatprep.subr.mxu0 0.0
    %1253 = vmatpush1.msra.mxu0 0.0
    %1254 = vmatprep.subr.mxu0 0.0
    %1255 = vmatpush1.msra.mxu0 0.0
    %1256 = vmatprep.subr.mxu0 0.0
    %1257 = vmatpush1.msra.mxu0 0.0
    %1258 = vmatprep.subr.mxu0 0.0
    %1259 = vmatpush1.msra.mxu0 0.0
    %1260 = vmatprep.subr.mxu0 0.0
    %1261 = vmatpush1.msra.mxu0 0.0
    %1262 = vmatprep.subr.mxu0 0.0
    %1263 = vmatpush1.msra.mxu0 0.0
    %1264 = vmatprep.subr.mxu0 0.0
    %1265 = vmatpush1.msra.mxu0 0.0
    %1266 = vmatprep.subr.mxu0 0.0
    %1267 = vmatpush1.msra.mxu0 0.0
    %1268 = vmatprep.subr.mxu0 0.0
    %1269 = vmatpush1.msra.mxu0 0.0
    %1270 = vmatprep.subr.mxu0 0.0
    %1271 = vmatpush1.msra.mxu0 0.0
    %1272 = vmatprep.subr.mxu0 0.0
    %1273 = vmatpush1.msra.mxu0 0.0
    %1274 = vmatprep.subr.mxu0 0.0
    %1275 = vmatpush1.msra.mxu0 0.0
    %1276 = vmatprep.subr.mxu0 0.0
    %1277 = vmatpush1.msra.mxu0 0.0
    %1278 = vmatprep.subr.mxu0 0.0
    %1279 = vmatpush1.msra.mxu0 0.0
    %1280 = vmatprep.subr.mxu0 0.0
    %1281 = vmatpush1.msra.mxu0 0.0
    %1282 = vmatprep.subr.mxu0 0.0
    %1283 = vmatpush1.msra.mxu0 0.0
    %1284 = vmatprep.subr.mxu0 0.0
    %1285 = vmatpush1.msra.mxu0 0.0
    %1286 = vmatprep.subr.mxu0 0.0
    %1287 = vmatpush1.msra.mxu0 0.0
    %1288 = vmatprep.subr.mxu0 0.0
    %1289 = vmatpush1.msra.mxu0 0.0
    %1290 = vmatprep.subr.mxu0 0.0
    %1291 = vmatpush1.msra.mxu0 0.0
    %1292 = vmatprep.subr.mxu0 0.0
    %1293 = vmatpush1.msra.mxu0 0.0
    %1294 = vmatprep.subr.mxu0 0.0
    %1295 = vmatpush1.msra.mxu0 0.0
    %1296 = vmatprep.subr.mxu0 0.0
    %1297 = vmatpush1.msra.mxu0 0.0
    %1298 = vmatprep.subr.mxu0 0.0
    %1299 = vmatpush1.msra.mxu0 0.0
    %1300 = vmatprep.subr.mxu0 0.0
    %1301 = vmatpush1.msra.mxu0 0.0
    %1302 = vmatprep.subr.mxu0 0.0
    %1303 = vmatpush1.msra.mxu0 0.0
    %1304 = vmatprep.subr.mxu0 0.0
    %1305 = vmatpush1.msra.mxu0 0.0
    %1306 = vmatprep.mubr.f32.mxu0 0.0
    %1307 = vmatmul.mubr.f32.gmra.mrb[0].mxu0 %v1240
    %v1308 = vpop.f32.mrb[0].mxu0
    %v1309 = vadd.f32 0.0, %v1308
    %v1310 = vpop.f32.mrb[0].mxu0
    %1311 = vdwg.mxu0
    %1313 = vrot.lane.b32.xlu0 %v1309, 16
    %v1314 = vpop.permute.xlu0 %1313
    %1316 = vst.msk [vmem:[%s975] sm:$0xff] %vm638, %v1314
    %1317 = vrot.lane.b32.xlu0 %v123, 104
    %v1318 = vpop.permute.xlu0 %1317
    %1319 = vrot.lane.b32.xlu0 %v123, 72
    %v1320 = vpop.permute.xlu0 %1319
    %v1321 = vsel %vm135, %v1318, 0
    %v1323 = vsel %vm135, %v1320, 0
    %1325 = vmatprep.subr.mxu0 0.0
    %1326 = vmatpush1.xpose.msra.mxu0 %v1323
    %1327 = vmatprep.subr.mxu0 0.0
    %1328 = vmatpush1.xpose.msra.mxu0 0.0
    %1329 = vmatprep.subr.mxu0 0.0
    %1330 = vmatpush1.xpose.msra.mxu0 0.0
    %1331 = vmatprep.subr.mxu0 0.0
    %1332 = vmatpush1.xpose.msra.mxu0 0.0
    %1333 = vmatprep.subr.mxu0 0.0
    %1334 = vmatpush1.xpose.msra.mxu0 0.0
    %1335 = vmatprep.subr.mxu0 0.0
    %1336 = vmatpush1.xpose.msra.mxu0 0.0
    %1337 = vmatprep.subr.mxu0 0.0
    %1338 = vmatpush1.xpose.msra.mxu0 0.0
    %1339 = vmatprep.subr.mxu0 0.0
    %1340 = vmatpush1.xpose.msra.mxu0 0.0
    %1341 = vmatprep.subr.mxu0 0.0
    %1342 = vmatpush1.xpose.msra.mxu0 0.0
    %1343 = vmatprep.subr.mxu0 0.0
    %1344 = vmatpush1.xpose.msra.mxu0 0.0
    %1345 = vmatprep.subr.mxu0 0.0
    %1346 = vmatpush1.xpose.msra.mxu0 0.0
    %1347 = vmatprep.subr.mxu0 0.0
    %1348 = vmatpush1.xpose.msra.mxu0 0.0
    %1349 = vmatprep.subr.mxu0 0.0
    %1350 = vmatpush1.xpose.msra.mxu0 0.0
    %1351 = vmatprep.subr.mxu0 0.0
    %1352 = vmatpush1.xpose.msra.mxu0 0.0
    %1353 = vmatprep.subr.mxu0 0.0
    %1354 = vmatpush1.xpose.msra.mxu0 0.0
    %1355 = vmatprep.subr.mxu0 0.0
    %1356 = vmatpush1.xpose.msra.mxu0 0.0
    %1357 = vmatprep.subr.mxu0 0.0
    %1358 = vmatpush1.xpose.msra.mxu0 0.0
    %1359 = vmatprep.subr.mxu0 0.0
    %1360 = vmatpush1.xpose.msra.mxu0 0.0
    %1361 = vmatprep.subr.mxu0 0.0
    %1362 = vmatpush1.xpose.msra.mxu0 0.0
    %1363 = vmatprep.subr.mxu0 0.0
    %1364 = vmatpush1.xpose.msra.mxu0 0.0
    %1365 = vmatprep.subr.mxu0 0.0
    %1366 = vmatpush1.xpose.msra.mxu0 0.0
    %1367 = vmatprep.subr.mxu0 0.0
    %1368 = vmatpush1.xpose.msra.mxu0 0.0
    %1369 = vmatprep.subr.mxu0 0.0
    %1370 = vmatpush1.xpose.msra.mxu0 0.0
    %1371 = vmatprep.subr.mxu0 0.0
    %1372 = vmatpush1.xpose.msra.mxu0 0.0
    %1373 = vmatprep.subr.mxu0 0.0
    %1374 = vmatpush1.xpose.msra.mxu0 0.0
    %1375 = vmatprep.subr.mxu0 0.0
    %1376 = vmatpush1.xpose.msra.mxu0 0.0
    %1377 = vmatprep.subr.mxu0 0.0
    %1378 = vmatpush1.xpose.msra.mxu0 0.0
    %1379 = vmatprep.subr.mxu0 0.0
    %1380 = vmatpush1.xpose.msra.mxu0 0.0
    %1381 = vmatprep.subr.mxu0 0.0
    %1382 = vmatpush1.xpose.msra.mxu0 0.0
    %1383 = vmatprep.subr.mxu0 0.0
    %1384 = vmatpush1.xpose.msra.mxu0 0.0
    %1385 = vmatprep.subr.mxu0 0.0
    %1386 = vmatpush1.xpose.msra.mxu0 0.0
    %1387 = vmatprep.subr.mxu0 0.0
    %1388 = vmatpush1.xpose.msra.mxu0 0.0
    %1389 = vmatprep.mubr.f32.mxu0 0.0
    %1390 = vmatmul.mubr.f32.gmra.mrb[0].mxu0 %v1321
    %v1391 = vpop.f32.mrb[0].mxu0
    %v1392 = vadd.f32 %v131, %v1391
    %v1393 = vpop.f32.mrb[0].mxu0
    %1394 = vdwg.mxu0
    %v1395 = vsel %vm135, %v1392, -inf
    %1396 = vmax.xlane.f32.xlu0 %v1395
    %v1397 = vpop.xlane.xlu0 %1396
    %v1398 = vsub.f32 %v1392, %v1397
    %v1399 = vmul.f32 %v1398, 1.442695
    %v1400 = vpow.pop %v1399
    %v1401 = vsel %vm135, %v1400, 0.0
    %1402 = vadd.xlane.f32.xlu0 %v1401
    %v1403 = vpop.xlane.xlu0 %1402
    %v1404 = vrcp.pop %v1403
    %v1405 = vmul.f32 %v1400, %v1404
    %1406 = vrot.lane.b32.xlu0 %v123, 40
    %v1407 = vpop.permute.xlu0 %1406
    %v1410 = vsel %vm135, %v1405, 0
    %1412 = vmatprep.subr.mxu0 0.0
    %1413 = vmatpush1.msra.mxu0 %v1407
    %1414 = vmatprep.subr.mxu0 0.0
    %1415 = vmatpush1.msra.mxu0 0.0
    %1416 = vmatprep.subr.mxu0 0.0
    %1417 = vmatpush1.msra.mxu0 0.0
    %1418 = vmatprep.subr.mxu0 0.0
    %1419 = vmatpush1.msra.mxu0 0.0
    %1420 = vmatprep.subr.mxu0 0.0
    %1421 = vmatpush1.msra.mxu0 0.0
    %1422 = vmatprep.subr.mxu0 0.0
    %1423 = vmatpush1.msra.mxu0 0.0
    %1424 = vmatprep.subr.mxu0 0.0
    %1425 = vmatpush1.msra.mxu0 0.0
    %1426 = vmatprep.subr.mxu0 0.0
    %1427 = vmatpush1.msra.mxu0 0.0
    %1428 = vmatprep.subr.mxu0 0.0
    %1429 = vmatpush1.msra.mxu0 0.0
    %1430 = vmatprep.subr.mxu0 0.0
    %1431 = vmatpush1.msra.mxu0 0.0
    %1432 = vmatprep.subr.mxu0 0.0
    %1433 = vmatpush1.msra.mxu0 0.0
    %1434 = vmatprep.subr.mxu0 0.0
    %1435 = vmatpush1.msra.mxu0 0.0
    %1436 = vmatprep.subr.mxu0 0.0
    %1437 = vmatpush1.msra.mxu0 0.0
    %1438 = vmatprep.subr.mxu0 0.0
    %1439 = vmatpush1.msra.mxu0 0.0
    %1440 = vmatprep.subr.mxu0 0.0
    %1441 = vmatpush1.msra.mxu0 0.0
    %1442 = vmatprep.subr.mxu0 0.0
    %1443 = vmatpush1.msra.mxu0 0.0
    %1444 = vmatprep.subr.mxu0 0.0
    %1445 = vmatpush1.msra.mxu0 0.0
    %1446 = vmatprep.subr.mxu0 0.0
    %1447 = vmatpush1.msra.mxu0 0.0
    %1448 = vmatprep.subr.mxu0 0.0
    %1449 = vmatpush1.msra.mxu0 0.0
    %1450 = vmatprep.subr.mxu0 0.0
    %1451 = vmatpush1.msra.mxu0 0.0
    %1452 = vmatprep.subr.mxu0 0.0
    %1453 = vmatpush1.msra.mxu0 0.0
    %1454 = vmatprep.subr.mxu0 0.0
    %1455 = vmatpush1.msra.mxu0 0.0
    %1456 = vmatprep.subr.mxu0 0.0
    %1457 = vmatpush1.msra.mxu0 0.0
    %1458 = vmatprep.subr.mxu0 0.0
    %1459 = vmatpush1.msra.mxu0 0.0
    %1460 = vmatprep.subr.mxu0 0.0
    %1461 = vmatpush1.msra.mxu0 0.0
    %1462 = vmatprep.subr.mxu0 0.0
    %1463 = vmatpush1.msra.mxu0 0.0
    %1464 = vmatprep.subr.mxu0 0.0
    %1465 = vmatpush1.msra.mxu0 0.0
    %1466 = vmatprep.subr.mxu0 0.0
    %1467 = vmatpush1.msra.mxu0 0.0
    %1468 = vmatprep.subr.mxu0 0.0
    %1469 = vmatpush1.msra.mxu0 0.0
    %1470 = vmatprep.subr.mxu0 0.0
    %1471 = vmatpush1.msra.mxu0 0.0
    %1472 = vmatprep.subr.mxu0 0.0
    %1473 = vmatpush1.msra.mxu0 0.0
    %1474 = vmatprep.subr.mxu0 0.0
    %1475 = vmatpush1.msra.mxu0 0.0
    %1476 = vmatprep.mubr.f32.mxu0 0.0
    %1477 = vmatmul.mubr.f32.gmra.mrb[0].mxu0 %v1410
    %v1478 = vpop.f32.mrb[0].mxu0
    %v1479 = vadd.f32 0.0, %v1478
    %v1480 = vpop.f32.mrb[0].mxu0
    %1481 = vdwg.mxu0
    %1483 = vrot.lane.b32.xlu0 %v1479, 24
    %v1484 = vpop.permute.xlu0 %1483
    %1486 = vst.msk [vmem:[%s975] sm:$0xff] %vm809, %v1484
    // Predicated region
    $region18: #{tpu_custom_call.1} parent=1 // pred_check
      _
    $region19: #{tpu_custom_call.1} parent=1 // pred_check_branch
      %1488 = sbr.rel (0) target = $region21
    $region20: #{tpu_custom_call.1} parent=1 // pred_region
      %s1490 = ssub.s32 256, 256
      %1491 = vsyncadd [#allocation4], %s1490
      %s1492 = sshll.u32 [#allocation7], 4
      %s1493 = int_to_ptr.vmem [resolvable:$true] %s1492
      %1498 = dma.vmem_to_hbm [thread:$0]  %s1493, 256, %s2, [#allocation4], 128, 128, 8
    $region21: #{tpu_custom_call.1} parent=1 // pred_fallthru
      _
    // Predicated region
    $region22: #{tpu_custom_call.1} parent=1 // pred_check
      _
    $region23: #{tpu_custom_call.1} parent=1 // pred_check_branch
      %1500 = sbr.rel (0) target = $region25
    $region24: #{tpu_custom_call.1} parent=1 // pred_region
      %1501 = dma.done [#allocation4], 256
    $region25: #{tpu_custom_call.1} parent=1 // pred_fallthru
      _
    %1502 = vsyncpa [#allocation3], 1
    %1503 = vsyncpa [#allocation6], 1
    %1504 = vsyncpa [#allocation4], 1

</llo_original>
